<compile_context>
chip_gen: v7x
topology: tpu7x:2x2x1
jax: 0.10.0
libtpu: 0.0.40
codegen_flags: <defaults>
</compile_context>

<pallas_src>
import jax
import jax.numpy as jnp
from jax.experimental import pallas as pl
from jax.experimental.pallas import tpu as pltpu

CPAD = 8        # channels padded to one sublane group
MARGIN = 128    # lane margin around the flattened padded spatial slab
                # (keeps interior stores 128-aligned; taps are in-bounds slices)


def ccr_block(x, w1, s1, b1, w3a, s2, b2, a1, w3b, s3, b3, a2):
    """CCRBlock forward (inference).

    x   : (N, Cin, H, W) float32, NCHW (PyTorch layout)
    w1  : (Cout, Cin, 1, 1)   1x1 conv weight (Resblock branch)
    w3a : (Cout, Cin, 3, 3)   first 3x3 conv weight
    w3b : (Cout, Cout, 3, 3)  second 3x3 conv weight
    s*/b* : (Cout,) folded BatchNorm scale / shift (running stats)
    a1,a2 : scalar PReLU alphas
    returns (N, Cout, H, W)
    """
    N, Cin, H, W = x.shape
    Cout = w1.shape[0]
    Hp, Wp = H + 2, W + 2
    PP = Hp * Wp
    NPP = N * PP
    BW = NPP + 2 * MARGIN
    # 3x3 tap offsets in flattened padded coordinates.
    offs = [(kh - 1) * Wp + (kw - 1) for kh in range(3) for kw in range(3)]

    # -------------- wrapper-side layout plumbing (pure JAX, one-off) ---------
    # Channels-first, 1px zero-padded, spatial flattened onto the lane axis,
    # with a zero lane-margin so every shifted tap is an in-bounds lane slice.
    xp = jnp.pad(x.astype(jnp.float32), ((0, 0), (0, CPAD - Cin), (1, 1), (1, 1)))
    xc = jnp.transpose(xp, (1, 0, 2, 3)).reshape(CPAD, NPP)
    x_wide = jnp.pad(xc, ((0, 0), (MARGIN, MARGIN)))

    # Interior mask: 1 inside every image, 0 on the 1-pixel halo (so the second
    # conv sees proper zero padding).
    m2 = jnp.zeros((Hp, Wp), jnp.float32).at[1:-1, 1:-1].set(1.0)
    mask = jnp.tile(m2.reshape(-1), N).reshape(1, NPP)

    # Fold BN scale into conv weights (per output channel); keep shifts as bias.
    w1m = jnp.pad(w1.reshape(Cout, Cin) * s1[:, None], ((0, 0), (0, CPAD - Cin)))

    def stack_weight(w, cin):
        # (Cout, cin, 3, 3) -> (Cout, 9*CPAD); column index = tap*CPAD + ci
        wt = jnp.transpose(w, (2, 3, 1, 0))                        # (3,3,cin,Cout)
        wt = jnp.pad(wt, ((0, 0), (0, 0), (0, CPAD - cin), (0, 0)))
        return wt.reshape(9 * CPAD, Cout).T                        # (Cout, 72)

    w3am = stack_weight(w3a, Cin) * s2[:, None]
    w3bm = stack_weight(w3b, Cout) * s3[:, None]

    b1v = b1.reshape(Cout, 1).astype(jnp.float32)
    b2v = b2.reshape(Cout, 1).astype(jnp.float32)
    b3v = b3.reshape(Cout, 1).astype(jnp.float32)
    a1v = jnp.reshape(a1, (1, 1)).astype(jnp.float32)
    a2v = jnp.reshape(a2, (1, 1)).astype(jnp.float32)

    # ------------------------------ the kernel -------------------------------
    def kernel(xw_ref, mask_ref, w1_ref, b1_ref, w3a_ref, b2_ref, a1_ref,
               w3b_ref, b3_ref, a2_ref, o_ref, stack_ref, yw_ref):
        mask_v = mask_ref[...]                                    # (1, NPP)

        # ---- first 3x3 conv: build shifted-tap stack, ONE matmul ----
        for t, off in enumerate(offs):
            stack_ref[pl.ds(t * CPAD, CPAD), :] = \
                xw_ref[:, pl.ds(MARGIN + off, NPP)]
        y = jnp.dot(w3a_ref[...], stack_ref[...],
                    preferred_element_type=jnp.float32)           # (Cout, NPP)
        y = y + b2_ref[...]                                       # folded BN shift
        alpha1 = a1_ref[0, 0]
        y = jnp.where(y > 0, y, alpha1 * y)                       # PReLU (shared)
        y = y * mask_v                                            # zero halo pixels

        # Stage y into the margined slab (margins only feed halo outputs that
        # the wrapper discards, but we zero them for hygiene: ~8 vregs).
        yw_ref[...] = jnp.zeros(yw_ref.shape, yw_ref.dtype)
        yw_ref[pl.ds(0, Cout), pl.ds(MARGIN, NPP)] = y

        # ---- second 3x3 conv ----
        for t, off in enumerate(offs):
            stack_ref[pl.ds(t * CPAD, CPAD), :] = \
                yw_ref[:, pl.ds(MARGIN + off, NPP)]
        y2 = jnp.dot(w3b_ref[...], stack_ref[...],
                     preferred_element_type=jnp.float32)
        y2 = y2 + b3_ref[...]
        alpha2 = a2_ref[0, 0]
        y2 = jnp.where(y2 > 0, y2, alpha2 * y2)                   # PReLU
        # Dropout(dp) is identity at inference.

        # ---- residual 1x1 branch last (short live range; x already in VMEM) --
        res = jnp.dot(w1_ref[...], xw_ref[:, pl.ds(MARGIN, NPP)],
                      preferred_element_type=jnp.float32) + b1_ref[...]

        o_ref[...] = (y2 + res).astype(o_ref.dtype)

    grid_spec = pltpu.PrefetchScalarGridSpec(
        num_scalar_prefetch=0,
        grid=(1,),
        in_specs=[
            pl.BlockSpec((CPAD, BW), lambda i: (0, 0)),            # x_wide
            pl.BlockSpec((1, NPP), lambda i: (0, 0)),              # interior mask
            pl.BlockSpec((Cout, CPAD), lambda i: (0, 0)),          # w1 (scale-folded)
            pl.BlockSpec((Cout, 1), lambda i: (0, 0)),             # b1
            pl.BlockSpec((Cout, 9 * CPAD), lambda i: (0, 0)),      # w3a stacked
            pl.BlockSpec((Cout, 1), lambda i: (0, 0)),             # b2
            pl.BlockSpec(memory_space=pltpu.MemorySpace.SMEM),     # alpha1 scalar
            pl.BlockSpec((Cout, 9 * CPAD), lambda i: (0, 0)),      # w3b stacked
            pl.BlockSpec((Cout, 1), lambda i: (0, 0)),             # b3
            pl.BlockSpec(memory_space=pltpu.MemorySpace.SMEM),     # alpha2 scalar
        ],
        out_specs=pl.BlockSpec((Cout, NPP), lambda i: (0, 0)),
        scratch_shapes=[
            pltpu.VMEM((9 * CPAD, NPP), jnp.float32),   # shifted-tap stack (reused)
            pltpu.VMEM((CPAD, BW), jnp.float32),        # margined mid activation
        ],
    )

    out_flat = pl.pallas_call(
        kernel,
        out_shape=jax.ShapeDtypeStruct((Cout, NPP), jnp.float32),
        grid_spec=grid_spec,
        compiler_params=pltpu.CompilerParams(
            dimension_semantics=("arbitrary",),
            vmem_limit_bytes=32 * 1024 * 1024),
    )(x_wide, mask, w1m, b1v, w3am, b2v, a1v, w3bm, b3v, a2v)

    # Crop the halo and go back to NCHW.
    out = out_flat.reshape(Cout, N, Hp, Wp).transpose(1, 0, 2, 3)
    return out[:, :, 1:-1, 1:-1]


def _bn_fold(key, c, eps=1e-5):
    k1, k2, k3, k4 = jax.random.split(key, 4)
    gamma = jax.random.uniform(k1, (c,), minval=0.5, maxval=1.5)
    beta = jax.random.normal(k2, (c,)) * 0.1
    mean = jax.random.normal(k3, (c,)) * 0.1
    var = jax.random.uniform(k4, (c,), minval=0.5, maxval=1.5)
    scale = gamma / jnp.sqrt(var + eps)
    shift = beta - mean * scale
    return scale.astype(jnp.float32), shift.astype(jnp.float32)


if __name__ == "__main__":
    key = jax.random.PRNGKey(0)
    ks = jax.random.split(key, 8)

    N, Cin, H, W = 2, 4, 16, 16
    Cout = 8

    x = jax.random.normal(ks[0], (N, Cin, H, W), jnp.float32)

    # PyTorch-layout conv weights (OIHW), folded BN params, PReLU alphas.
    w1 = (jax.random.normal(ks[1], (Cout, Cin, 1, 1)) * 0.2).astype(jnp.float32)
    w3a = (jax.random.normal(ks[2], (Cout, Cin, 3, 3)) * 0.2).astype(jnp.float32)
    w3b = (jax.random.normal(ks[3], (Cout, Cout, 3, 3)) * 0.2).astype(jnp.float32)
    s1, b1 = _bn_fold(ks[4], Cout)
    s2, b2 = _bn_fold(ks[5], Cout)
    s3, b3 = _bn_fold(ks[6], Cout)
    a1 = jnp.float32(0.25)   # nn.PReLU() default init (single shared alpha)
    a2 = jnp.float32(0.25)

    run = jax.jit(ccr_block)
    out = jax.block_until_ready(run(x, w1, s1, b1, w3a, s2, b2, a1, w3b, s3, b3, a2))

    # Pure-JAX NCHW reference for a sanity check.
    def conv(xx, ww):
        return jax.lax.conv_general_dilated(
            xx, ww, (1, 1), "SAME", dimension_numbers=("NCHW", "OIHW", "NCHW"))

    def bn(t, s, b):
        return t * s.reshape(1, -1, 1, 1) + b.reshape(1, -1, 1, 1)

    res_ref = bn(conv(x, w1), s1, b1)
    yr = bn(conv(x, w3a), s2, b2)
    yr = jnp.where(yr > 0, yr, 0.25 * yr)
    yr = bn(conv(yr, w3b), s3, b3)
    yr = jnp.where(yr > 0, yr, 0.25 * yr)
    ref = yr + res_ref

    assert out.shape == (N, Cout, H, W)
    max_err = float(jnp.max(jnp.abs(out - ref)))
    assert jnp.allclose(out, ref, atol=2e-3, rtol=2e-3), max_err

    print("KERNEL_OK")
</pallas_src>

<mosaic_0001>
module attributes {stable_mosaic.version = 11 : i64} {
  func.func @kernel(%arg0: i32, %arg1: memref<8x904xf32, #tpu.memory_space<vmem>>, %arg2: memref<1x648xf32, #tpu.memory_space<vmem>>, %arg3: memref<8x8xf32, #tpu.memory_space<vmem>>, %arg4: memref<8x1xf32, #tpu.memory_space<vmem>>, %arg5: memref<8x72xf32, #tpu.memory_space<vmem>>, %arg6: memref<8x1xf32, #tpu.memory_space<vmem>>, %arg7: memref<1x1xf32, #tpu.memory_space<smem>>, %arg8: memref<8x72xf32, #tpu.memory_space<vmem>>, %arg9: memref<8x1xf32, #tpu.memory_space<vmem>>, %arg10: memref<1x1xf32, #tpu.memory_space<smem>>, %arg11: memref<8x648xf32, #tpu.memory_space<vmem>>, %arg12: memref<72x648xf32, #tpu.memory_space<vmem>>, %arg13: memref<8x904xf32, #tpu.memory_space<vmem>>) attributes {dimension_semantics = [#tpu.dimension_semantics<arbitrary>], iteration_bounds = array<i64: 1>, scalar_prefetch = 0 : i64, scratch_operands = 2 : i64, tpu.core_type = #tpu.core_type<tc>, window_params = [{pipeline_mode = #tpu.pipeline_mode<synchronous>, transform_indices = @transform_0, window_bounds = array<i64: 8, 904>}, {pipeline_mode = #tpu.pipeline_mode<synchronous>, transform_indices = @transform_1, window_bounds = array<i64: 1, 648>}, {pipeline_mode = #tpu.pipeline_mode<synchronous>, transform_indices = @transform_2, window_bounds = array<i64: 8, 8>}, {pipeline_mode = #tpu.pipeline_mode<synchronous>, transform_indices = @transform_3, window_bounds = array<i64: 8, 1>}, {pipeline_mode = #tpu.pipeline_mode<synchronous>, transform_indices = @transform_4, window_bounds = array<i64: 8, 72>}, {pipeline_mode = #tpu.pipeline_mode<synchronous>, transform_indices = @transform_5, window_bounds = array<i64: 8, 1>}, {transform_indices = @transform_6, window_bounds = array<i64: 1, 1>}, {pipeline_mode = #tpu.pipeline_mode<synchronous>, transform_indices = @transform_7, window_bounds = array<i64: 8, 72>}, {pipeline_mode = #tpu.pipeline_mode<synchronous>, transform_indices = @transform_8, window_bounds = array<i64: 8, 1>}, {transform_indices = @transform_9, window_bounds = array<i64: 1, 1>}, {pipeline_mode = #tpu.pipeline_mode<synchronous>, transform_indices = @transform_10, window_bounds = array<i64: 8, 648>}]} {
    %c0 = arith.constant 0 : index
    %c0_0 = arith.constant 0 : index
    %0 = vector.load %arg2[%c0, %c0_0] : memref<1x648xf32, #tpu.memory_space<vmem>>, vector<1x648xf32>
    %c0_1 = arith.constant 0 : index
    %c109 = arith.constant 109 : index
    %1 = vector.load %arg1[%c0_1, %c109] : memref<8x904xf32, #tpu.memory_space<vmem>>, vector<8x648xf32>
    %c0_2 = arith.constant 0 : index
    %c0_3 = arith.constant 0 : index
    %2 = vector.load %arg12[%c0_2, %c0_3] : memref<72x648xf32, #tpu.memory_space<vmem>>, vector<8x648xf32>
    tpu.vector_store %arg12[%c0_2, %c0_3], %1 {strides = array<i32>} : memref<72x648xf32, #tpu.memory_space<vmem>>, vector<8x648xf32>,
    %c0_4 = arith.constant 0 : index
    %c110 = arith.constant 110 : index
    %3 = vector.load %arg1[%c0_4, %c110] : memref<8x904xf32, #tpu.memory_space<vmem>>, vector<8x648xf32>
    %c8 = arith.constant 8 : index
    %c0_5 = arith.constant 0 : index
    %4 = vector.load %arg12[%c8, %c0_5] : memref<72x648xf32, #tpu.memory_space<vmem>>, vector<8x648xf32>
    tpu.vector_store %arg12[%c8, %c0_5], %3 {strides = array<i32>} : memref<72x648xf32, #tpu.memory_space<vmem>>, vector<8x648xf32>,
    %c0_6 = arith.constant 0 : index
    %c111 = arith.constant 111 : index
    %5 = vector.load %arg1[%c0_6, %c111] : memref<8x904xf32, #tpu.memory_space<vmem>>, vector<8x648xf32>
    %c16 = arith.constant 16 : index
    %c0_7 = arith.constant 0 : index
    %6 = vector.load %arg12[%c16, %c0_7] : memref<72x648xf32, #tpu.memory_space<vmem>>, vector<8x648xf32>
    tpu.vector_store %arg12[%c16, %c0_7], %5 {strides = array<i32>} : memref<72x648xf32, #tpu.memory_space<vmem>>, vector<8x648xf32>,
    %c0_8 = arith.constant 0 : index
    %c127 = arith.constant 127 : index
    %7 = vector.load %arg1[%c0_8, %c127] : memref<8x904xf32, #tpu.memory_space<vmem>>, vector<8x648xf32>
    %c24 = arith.constant 24 : index
    %c0_9 = arith.constant 0 : index
    %8 = vector.load %arg12[%c24, %c0_9] : memref<72x648xf32, #tpu.memory_space<vmem>>, vector<8x648xf32>
    tpu.vector_store %arg12[%c24, %c0_9], %7 {strides = array<i32>} : memref<72x648xf32, #tpu.memory_space<vmem>>, vector<8x648xf32>,
    %c0_10 = arith.constant 0 : index
    %c128 = arith.constant 128 : index
    %9 = vector.load %arg1[%c0_10, %c128] : memref<8x904xf32, #tpu.memory_space<vmem>>, vector<8x648xf32>
    %c32 = arith.constant 32 : index
    %c0_11 = arith.constant 0 : index
    %10 = vector.load %arg12[%c32, %c0_11] : memref<72x648xf32, #tpu.memory_space<vmem>>, vector<8x648xf32>
    tpu.vector_store %arg12[%c32, %c0_11], %9 {strides = array<i32>} : memref<72x648xf32, #tpu.memory_space<vmem>>, vector<8x648xf32>,
    %c0_12 = arith.constant 0 : index
    %c129 = arith.constant 129 : index
    %11 = vector.load %arg1[%c0_12, %c129] : memref<8x904xf32, #tpu.memory_space<vmem>>, vector<8x648xf32>
    %c40 = arith.constant 40 : index
    %c0_13 = arith.constant 0 : index
    %12 = vector.load %arg12[%c40, %c0_13] : memref<72x648xf32, #tpu.memory_space<vmem>>, vector<8x648xf32>
    tpu.vector_store %arg12[%c40, %c0_13], %11 {strides = array<i32>} : memref<72x648xf32, #tpu.memory_space<vmem>>, vector<8x648xf32>,
    %c0_14 = arith.constant 0 : index
    %c145 = arith.constant 145 : index
    %13 = vector.load %arg1[%c0_14, %c145] : memref<8x904xf32, #tpu.memory_space<vmem>>, vector<8x648xf32>
    %c48 = arith.constant 48 : index
    %c0_15 = arith.constant 0 : index
    %14 = vector.load %arg12[%c48, %c0_15] : memref<72x648xf32, #tpu.memory_space<vmem>>, vector<8x648xf32>
    tpu.vector_store %arg12[%c48, %c0_15], %13 {strides = array<i32>} : memref<72x648xf32, #tpu.memory_space<vmem>>, vector<8x648xf32>,
    %c0_16 = arith.constant 0 : index
    %c146 = arith.constant 146 : index
    %15 = vector.load %arg1[%c0_16, %c146] : memref<8x904xf32, #tpu.memory_space<vmem>>, vector<8x648xf32>
    %c56 = arith.constant 56 : index
    %c0_17 = arith.constant 0 : index
    %16 = vector.load %arg12[%c56, %c0_17] : memref<72x648xf32, #tpu.memory_space<vmem>>, vector<8x648xf32>
    tpu.vector_store %arg12[%c56, %c0_17], %15 {strides = array<i32>} : memref<72x648xf32, #tpu.memory_space<vmem>>, vector<8x648xf32>,
    %c0_18 = arith.constant 0 : index
    %c147 = arith.constant 147 : index
    %17 = vector.load %arg1[%c0_18, %c147] : memref<8x904xf32, #tpu.memory_space<vmem>>, vector<8x648xf32>
    %c64 = arith.constant 64 : index
    %c0_19 = arith.constant 0 : index
    %18 = vector.load %arg12[%c64, %c0_19] : memref<72x648xf32, #tpu.memory_space<vmem>>, vector<8x648xf32>
    tpu.vector_store %arg12[%c64, %c0_19], %17 {strides = array<i32>} : memref<72x648xf32, #tpu.memory_space<vmem>>, vector<8x648xf32>,
    %c0_20 = arith.constant 0 : index
    %c0_21 = arith.constant 0 : index
    %19 = vector.load %arg5[%c0_20, %c0_21] : memref<8x72xf32, #tpu.memory_space<vmem>>, vector<8x72xf32>
    %c0_22 = arith.constant 0 : index
    %c0_23 = arith.constant 0 : index
    %20 = vector.load %arg12[%c0_22, %c0_23] : memref<72x648xf32, #tpu.memory_space<vmem>>, vector<72x648xf32>
    %cst = arith.constant dense<0.000000e+00> : vector<8x648xf32>
    %21 = tpu.matmul %19, %20, %cst {dimension_numbers = #tpu.dot_dimension_numbers<[1], [0], [0], [1], [0, 0, 1, 1], [], []>} : vector<8x72xf32>, vector<72x648xf32>, vector<8x648xf32> -> vector<8x648xf32>
    %c0_24 = arith.constant 0 : index
    %c0_25 = arith.constant 0 : index
    %22 = vector.load %arg6[%c0_24, %c0_25] : memref<8x1xf32, #tpu.memory_space<vmem>>, vector<8x1xf32>
    %23 = vector.broadcast %22 : vector<8x1xf32> to vector<8x648xf32>
    %24 = arith.addf %21, %23 : vector<8x648xf32>
    %c0_26 = arith.constant 0 : index
    %c0_27 = arith.constant 0 : index
    %25 = memref.load %arg7[%c0_26, %c0_27] : memref<1x1xf32, #tpu.memory_space<smem>>
    %cst_28 = arith.constant 0.000000e+00 : f32
    %26 = vector.broadcast %cst_28 : f32 to vector<8x648xf32>
    %27 = arith.cmpf ogt, %24, %26 : vector<8x648xf32>
    %28 = vector.broadcast %25 : f32 to vector<8x648xf32>
    %29 = arith.mulf %28, %24 : vector<8x648xf32>
    %30 = arith.select %27, %24, %29 : vector<8x648xi1>, vector<8x648xf32>
    %31 = vector.broadcast %0 : vector<1x648xf32> to vector<8x648xf32>
    %32 = arith.mulf %30, %31 : vector<8x648xf32>
    %cst_29 = arith.constant 0.000000e+00 : f32
    %33 = vector.broadcast %cst_29 : f32 to vector<8x904xf32>
    %c0_30 = arith.constant 0 : index
    %c0_31 = arith.constant 0 : index
    %34 = vector.load %arg13[%c0_30, %c0_31] : memref<8x904xf32, #tpu.memory_space<vmem>>, vector<8x904xf32>
    tpu.vector_store %arg13[%c0_30, %c0_31], %33 {strides = array<i32>} : memref<8x904xf32, #tpu.memory_space<vmem>>, vector<8x904xf32>,
    %c0_32 = arith.constant 0 : index
    %c128_33 = arith.constant 128 : index
    %35 = vector.load %arg13[%c0_32, %c128_33] : memref<8x904xf32, #tpu.memory_space<vmem>>, vector<8x648xf32>
    tpu.vector_store %arg13[%c0_32, %c128_33], %32 {strides = array<i32>} : memref<8x904xf32, #tpu.memory_space<vmem>>, vector<8x648xf32>,
    %c0_34 = arith.constant 0 : index
    %c109_35 = arith.constant 109 : index
    %36 = vector.load %arg13[%c0_34, %c109_35] : memref<8x904xf32, #tpu.memory_space<vmem>>, vector<8x648xf32>
    %c0_36 = arith.constant 0 : index
    %c0_37 = arith.constant 0 : index
    %37 = vector.load %arg12[%c0_36, %c0_37] : memref<72x648xf32, #tpu.memory_space<vmem>>, vector<8x648xf32>
    tpu.vector_store %arg12[%c0_36, %c0_37], %36 {strides = array<i32>} : memref<72x648xf32, #tpu.memory_space<vmem>>, vector<8x648xf32>,
    %c0_38 = arith.constant 0 : index
    %c110_39 = arith.constant 110 : index
    %38 = vector.load %arg13[%c0_38, %c110_39] : memref<8x904xf32, #tpu.memory_space<vmem>>, vector<8x648xf32>
    %c8_40 = arith.constant 8 : index
    %c0_41 = arith.constant 0 : index
    %39 = vector.load %arg12[%c8_40, %c0_41] : memref<72x648xf32, #tpu.memory_space<vmem>>, vector<8x648xf32>
    tpu.vector_store %arg12[%c8_40, %c0_41], %38 {strides = array<i32>} : memref<72x648xf32, #tpu.memory_space<vmem>>, vector<8x648xf32>,
    %c0_42 = arith.constant 0 : index
    %c111_43 = arith.constant 111 : index
    %40 = vector.load %arg13[%c0_42, %c111_43] : memref<8x904xf32, #tpu.memory_space<vmem>>, vector<8x648xf32>
    %c16_44 = arith.constant 16 : index
    %c0_45 = arith.constant 0 : index
    %41 = vector.load %arg12[%c16_44, %c0_45] : memref<72x648xf32, #tpu.memory_space<vmem>>, vector<8x648xf32>
    tpu.vector_store %arg12[%c16_44, %c0_45], %40 {strides = array<i32>} : memref<72x648xf32, #tpu.memory_space<vmem>>, vector<8x648xf32>,
    %c0_46 = arith.constant 0 : index
    %c127_47 = arith.constant 127 : index
    %42 = vector.load %arg13[%c0_46, %c127_47] : memref<8x904xf32, #tpu.memory_space<vmem>>, vector<8x648xf32>
    %c24_48 = arith.constant 24 : index
    %c0_49 = arith.constant 0 : index
    %43 = vector.load %arg12[%c24_48, %c0_49] : memref<72x648xf32, #tpu.memory_space<vmem>>, vector<8x648xf32>
    tpu.vector_store %arg12[%c24_48, %c0_49], %42 {strides = array<i32>} : memref<72x648xf32, #tpu.memory_space<vmem>>, vector<8x648xf32>,
    %c0_50 = arith.constant 0 : index
    %c128_51 = arith.constant 128 : index
    %44 = vector.load %arg13[%c0_50, %c128_51] : memref<8x904xf32, #tpu.memory_space<vmem>>, vector<8x648xf32>
    %c32_52 = arith.constant 32 : index
    %c0_53 = arith.constant 0 : index
    %45 = vector.load %arg12[%c32_52, %c0_53] : memref<72x648xf32, #tpu.memory_space<vmem>>, vector<8x648xf32>
    tpu.vector_store %arg12[%c32_52, %c0_53], %44 {strides = array<i32>} : memref<72x648xf32, #tpu.memory_space<vmem>>, vector<8x648xf32>,
    %c0_54 = arith.constant 0 : index
    %c129_55 = arith.constant 129 : index
    %46 = vector.load %arg13[%c0_54, %c129_55] : memref<8x904xf32, #tpu.memory_space<vmem>>, vector<8x648xf32>
    %c40_56 = arith.constant 40 : index
    %c0_57 = arith.constant 0 : index
    %47 = vector.load %arg12[%c40_56, %c0_57] : memref<72x648xf32, #tpu.memory_space<vmem>>, vector<8x648xf32>
    tpu.vector_store %arg12[%c40_56, %c0_57], %46 {strides = array<i32>} : memref<72x648xf32, #tpu.memory_space<vmem>>, vector<8x648xf32>,
    %c0_58 = arith.constant 0 : index
    %c145_59 = arith.constant 145 : index
    %48 = vector.load %arg13[%c0_58, %c145_59] : memref<8x904xf32, #tpu.memory_space<vmem>>, vector<8x648xf32>
    %c48_60 = arith.constant 48 : index
    %c0_61 = arith.constant 0 : index
    %49 = vector.load %arg12[%c48_60, %c0_61] : memref<72x648xf32, #tpu.memory_space<vmem>>, vector<8x648xf32>
    tpu.vector_store %arg12[%c48_60, %c0_61], %48 {strides = array<i32>} : memref<72x648xf32, #tpu.memory_space<vmem>>, vector<8x648xf32>,
    %c0_62 = arith.constant 0 : index
    %c146_63 = arith.constant 146 : index
    %50 = vector.load %arg13[%c0_62, %c146_63] : memref<8x904xf32, #tpu.memory_space<vmem>>, vector<8x648xf32>
    %c56_64 = arith.constant 56 : index
    %c0_65 = arith.constant 0 : index
    %51 = vector.load %arg12[%c56_64, %c0_65] : memref<72x648xf32, #tpu.memory_space<vmem>>, vector<8x648xf32>
    tpu.vector_store %arg12[%c56_64, %c0_65], %50 {strides = array<i32>} : memref<72x648xf32, #tpu.memory_space<vmem>>, vector<8x648xf32>,
    %c0_66 = arith.constant 0 : index
    %c147_67 = arith.constant 147 : index
    %52 = vector.load %arg13[%c0_66, %c147_67] : memref<8x904xf32, #tpu.memory_space<vmem>>, vector<8x648xf32>
    %c64_68 = arith.constant 64 : index
    %c0_69 = arith.constant 0 : index
    %53 = vector.load %arg12[%c64_68, %c0_69] : memref<72x648xf32, #tpu.memory_space<vmem>>, vector<8x648xf32>
    tpu.vector_store %arg12[%c64_68, %c0_69], %52 {strides = array<i32>} : memref<72x648xf32, #tpu.memory_space<vmem>>, vector<8x648xf32>,
    %c0_70 = arith.constant 0 : index
    %c0_71 = arith.constant 0 : index
    %54 = vector.load %arg8[%c0_70, %c0_71] : memref<8x72xf32, #tpu.memory_space<vmem>>, vector<8x72xf32>
    %c0_72 = arith.constant 0 : index
    %c0_73 = arith.constant 0 : index
    %55 = vector.load %arg12[%c0_72, %c0_73] : memref<72x648xf32, #tpu.memory_space<vmem>>, vector<72x648xf32>
    %cst_74 = arith.constant dense<0.000000e+00> : vector<8x648xf32>
    %56 = tpu.matmul %54, %55, %cst_74 {dimension_numbers = #tpu.dot_dimension_numbers<[1], [0], [0], [1], [0, 0, 1, 1], [], []>} : vector<8x72xf32>, vector<72x648xf32>, vector<8x648xf32> -> vector<8x648xf32>
    %c0_75 = arith.constant 0 : index
    %c0_76 = arith.constant 0 : index
    %57 = vector.load %arg9[%c0_75, %c0_76] : memref<8x1xf32, #tpu.memory_space<vmem>>, vector<8x1xf32>
    %58 = vector.broadcast %57 : vector<8x1xf32> to vector<8x648xf32>
    %59 = arith.addf %56, %58 : vector<8x648xf32>
    %c0_77 = arith.constant 0 : index
    %c0_78 = arith.constant 0 : index
    %60 = memref.load %arg10[%c0_77, %c0_78] : memref<1x1xf32, #tpu.memory_space<smem>>
    %cst_79 = arith.constant 0.000000e+00 : f32
    %61 = vector.broadcast %cst_79 : f32 to vector<8x648xf32>
    %62 = arith.cmpf ogt, %59, %61 : vector<8x648xf32>
    %63 = vector.broadcast %60 : f32 to vector<8x648xf32>
    %64 = arith.mulf %63, %59 : vector<8x648xf32>
    %65 = arith.select %62, %59, %64 : vector<8x648xi1>, vector<8x648xf32>
    %c0_80 = arith.constant 0 : index
    %c0_81 = arith.constant 0 : index
    %66 = vector.load %arg3[%c0_80, %c0_81] : memref<8x8xf32, #tpu.memory_space<vmem>>, vector<8x8xf32>
    %c0_82 = arith.constant 0 : index
    %c128_83 = arith.constant 128 : index
    %67 = vector.load %arg1[%c0_82, %c128_83] : memref<8x904xf32, #tpu.memory_space<vmem>>, vector<8x648xf32>
    %cst_84 = arith.constant dense<0.000000e+00> : vector<8x648xf32>
    %68 = tpu.matmul %66, %67, %cst_84 {dimension_numbers = #tpu.dot_dimension_numbers<[1], [0], [0], [1], [0, 0, 1, 1], [], []>} : vector<8x8xf32>, vector<8x648xf32>, vector<8x648xf32> -> vector<8x648xf32>
    %c0_85 = arith.constant 0 : index
    %c0_86 = arith.constant 0 : index
    %69 = vector.load %arg4[%c0_85, %c0_86] : memref<8x1xf32, #tpu.memory_space<vmem>>, vector<8x1xf32>
    %70 = vector.broadcast %69 : vector<8x1xf32> to vector<8x648xf32>
    %71 = arith.addf %68, %70 : vector<8x648xf32>
    %72 = arith.addf %65, %71 : vector<8x648xf32>
    %c0_87 = arith.constant 0 : index
    %c0_88 = arith.constant 0 : index
    %73 = vector.load %arg11[%c0_87, %c0_88] : memref<8x648xf32, #tpu.memory_space<vmem>>, vector<8x648xf32>
    tpu.vector_store %arg11[%c0_87, %c0_88], %72 {strides = array<i32>} : memref<8x648xf32, #tpu.memory_space<vmem>>, vector<8x648xf32>,
    return
  }
  func.func @transform_0(%arg0: i32) -> (i32, i32) {
    %c0_i32 = arith.constant 0 : i32
    %c0_i32_0 = arith.constant 0 : i32
    %c0_i32_1 = arith.constant 0 : i32
    return %c0_i32, %c0_i32_0 : i32, i32
  }
  func.func @transform_1(%arg0: i32) -> (i32, i32) {
    %c0_i32 = arith.constant 0 : i32
    %c0_i32_0 = arith.constant 0 : i32
    %c0_i32_1 = arith.constant 0 : i32
    return %c0_i32, %c0_i32_0 : i32, i32
  }
  func.func @transform_2(%arg0: i32) -> (i32, i32) {
    %c0_i32 = arith.constant 0 : i32
    %c0_i32_0 = arith.constant 0 : i32
    %c0_i32_1 = arith.constant 0 : i32
    return %c0_i32, %c0_i32_0 : i32, i32
  }
  func.func @transform_3(%arg0: i32) -> (i32, i32) {
    %c0_i32 = arith.constant 0 : i32
    %c0_i32_0 = arith.constant 0 : i32
    %c0_i32_1 = arith.constant 0 : i32
    return %c0_i32, %c0_i32_0 : i32, i32
  }
  func.func @transform_4(%arg0: i32) -> (i32, i32) {
    %c0_i32 = arith.constant 0 : i32
    %c0_i32_0 = arith.constant 0 : i32
    %c0_i32_1 = arith.constant 0 : i32
    return %c0_i32, %c0_i32_0 : i32, i32
  }
  func.func @transform_5(%arg0: i32) -> (i32, i32) {
    %c0_i32 = arith.constant 0 : i32
    %c0_i32_0 = arith.constant 0 : i32
    %c0_i32_1 = arith.constant 0 : i32
    return %c0_i32, %c0_i32_0 : i32, i32
  }
  func.func @transform_6(%arg0: i32) -> (i32, i32) {
    %c0_i32 = arith.constant 0 : i32
    %c0_i32_0 = arith.constant 0 : i32
    %c0_i32_1 = arith.constant 0 : i32
    return %c0_i32, %c0_i32_0 : i32, i32
  }
  func.func @transform_7(%arg0: i32) -> (i32, i32) {
    %c0_i32 = arith.constant 0 : i32
    %c0_i32_0 = arith.constant 0 : i32
    %c0_i32_1 = arith.constant 0 : i32
    return %c0_i32, %c0_i32_0 : i32, i32
  }
  func.func @transform_8(%arg0: i32) -> (i32, i32) {
    %c0_i32 = arith.constant 0 : i32
    %c0_i32_0 = arith.constant 0 : i32
    %c0_i32_1 = arith.constant 0 : i32
    return %c0_i32, %c0_i32_0 : i32, i32
  }
  func.func @transform_9(%arg0: i32) -> (i32, i32) {
    %c0_i32 = arith.constant 0 : i32
    %c0_i32_0 = arith.constant 0 : i32
    %c0_i32_1 = arith.constant 0 : i32
    return %c0_i32, %c0_i32_0 : i32, i32
  }
  func.func @transform_10(%arg0: i32) -> (i32, i32) {
    %c0_i32 = arith.constant 0 : i32
    %c0_i32_0 = arith.constant 0 : i32
    %c0_i32_1 = arith.constant 0 : i32
    return %c0_i32, %c0_i32_0 : i32, i32
  }
}

</mosaic_0001>

<llo_original>
// kernel: tile.5
$region0: #{tile.5}
  %s0 = inlined_call_operand.vmem [shape: f32[18,18], index: 0, kind: input, shape index: {}]
  %s1 = inlined_call_operand.vmem [shape: f32[324], index: 1, kind: output, shape index: {}]
  $region1: #{tile.5} parent=0
    #allocation0 [shape = 'u8[4096]{0}', space=vmem, size = 0x1000, scoped, tag = 'scoped mem for output reshape']
    %v2 = vld [vmem:[%s0] sm:$0x1]
    %vm3 = vcmask 146432
    %4 = vst.msk [vmem:[#allocation0] sm:$0x1] %vm3, %v2
    %s5 = scalar_lea.vmem %s0, 7
    %v6 = vld [vmem:[%s5] sm:$0x1]
    %s7 = scalar_lea.vmem %s0, 7
    %v8 = vld [vmem:[%s7] sm:$0x1]
    %vm9 = vcmask 15360
    %v10 = vsel %vm9, %v8, %v6
    %11 = vrot.lane.b32.xlu0 %v10, 126
    %v12 = vpop.permute.xlu0 %11
    %vm13 = vcmask 130048
    %s14 = scalar_lea.vmem [#allocation0], 1
    %15 = vst.msk [vmem:[%s14] sm:$0x1] %vm13, %v12
    %vm16 = vcmask 1048560
    %17 = vst.msk [vmem:[#allocation0] sm:$0x1] %vm16, %v12
    %s18 = scalar_lea.vmem %s0, 14
    %v19 = vld [vmem:[%s18] sm:$0x1]
    %s20 = scalar_lea.vmem %s0, 14
    %v21 = vld [vmem:[%s20] sm:$0x1]
    %vm22 = vcmask 31744
    %v23 = vsel %vm22, %v21, %v19
    %24 = vrot.lane.b32.xlu0 %v23, 124
    %v25 = vpop.permute.xlu0 %24
    %vm26 = vcmask 113664
    %s27 = scalar_lea.vmem [#allocation0], 2
    %28 = vst.msk [vmem:[%s27] sm:$0x1] %vm26, %v25
    %vm29 = vcmask 1048544
    %s30 = scalar_lea.vmem [#allocation0], 1
    %31 = vst.msk [vmem:[%s30] sm:$0x1] %vm29, %v25
    %s32 = scalar_lea.vmem %s0, 6
    %v33 = vld [vmem:[%s32] sm:$0x1]
    %34 = vrot.lane.b32.xlu0 %v33, 108
    %v35 = vpop.permute.xlu0 %34
    %vm36 = vcmask 1032032
    %37 = vst.msk [vmem:[#allocation0] sm:$0x1] %vm36, %v35
    %s38 = scalar_lea.vmem %s0, 13
    %v39 = vld [vmem:[%s38] sm:$0x1]
    %40 = vrot.lane.b32.xlu0 %v39, 106
    %v41 = vpop.permute.xlu0 %40
    %vm42 = vcmask 1015632
    %s43 = scalar_lea.vmem [#allocation0], 1
    %44 = vst.msk [vmem:[%s43] sm:$0x1] %vm42, %v41
    %s45 = scalar_lea.vmem %s0, 5
    %v46 = vld [vmem:[%s45] sm:$0x1]
    %47 = vrot.lane.b32.xlu0 %v46, 90
    %v48 = vpop.permute.xlu0 %47
    %vm49 = vcmask 884432
    %50 = vst.msk [vmem:[#allocation0] sm:$0x1] %vm49, %v48
    %s51 = scalar_lea.vmem %s0, 12
    %v52 = vld [vmem:[%s51] sm:$0x1]
    %53 = vrot.lane.b32.xlu0 %v52, 88
    %v54 = vpop.permute.xlu0 %53
    %vm55 = vcmask 868032
    %s56 = scalar_lea.vmem [#allocation0], 1
    %57 = vst.msk [vmem:[%s56] sm:$0x1] %vm55, %v54
    %s58 = scalar_lea.vmem %s0, 4
    %v59 = vld [vmem:[%s58] sm:$0x1]
    %60 = vrot.lane.b32.xlu0 %v59, 72
    %v61 = vpop.permute.xlu0 %60
    %vm62 = vcmask 736832
    %63 = vst.msk [vmem:[#allocation0] sm:$0x1] %vm62, %v61
    %s64 = scalar_lea.vmem %s0, 11
    %v65 = vld [vmem:[%s64] sm:$0x1]
    %66 = vrot.lane.b32.xlu0 %v65, 70
    %v67 = vpop.permute.xlu0 %66
    %vm68 = vcmask 720432
    %s69 = scalar_lea.vmem [#allocation0], 1
    %70 = vst.msk [vmem:[%s69] sm:$0x1] %vm68, %v67
    %s71 = scalar_lea.vmem %s0, 3
    %v72 = vld [vmem:[%s71] sm:$0x1]
    %73 = vrot.lane.b32.xlu0 %v72, 54
    %v74 = vpop.permute.xlu0 %73
    %vm75 = vcmask 589232
    %76 = vst.msk [vmem:[#allocation0] sm:$0x1] %vm75, %v74
    %s77 = scalar_lea.vmem %s0, 10
    %v78 = vld [vmem:[%s77] sm:$0x1]
    %79 = vrot.lane.b32.xlu0 %v78, 52
    %v80 = vpop.permute.xlu0 %79
    %vm81 = vcmask 572832
    %s82 = scalar_lea.vmem [#allocation0], 1
    %83 = vst.msk [vmem:[%s82] sm:$0x1] %vm81, %v80
    %s84 = scalar_lea.vmem %s0, 17
    %v85 = vld [vmem:[%s84] sm:$0x1]
    %86 = vrot.lane.b32.xlu0 %v85, 50
    %v87 = vpop.permute.xlu0 %86
    %vm88 = vcmask 556432
    %s89 = scalar_lea.vmem [#allocation0], 2
    %90 = vst.msk [vmem:[%s89] sm:$0x1] %vm88, %v87
    %s91 = scalar_lea.vmem %s0, 2
    %v92 = vld [vmem:[%s91] sm:$0x1]
    %93 = vrot.lane.b32.xlu0 %v92, 36
    %v94 = vpop.permute.xlu0 %93
    %vm95 = vcmask 441632
    %96 = vst.msk [vmem:[#allocation0] sm:$0x1] %vm95, %v94
    %s97 = scalar_lea.vmem %s0, 9
    %v98 = vld [vmem:[%s97] sm:$0x1]
    %99 = vrot.lane.b32.xlu0 %v98, 34
    %v100 = vpop.permute.xlu0 %99
    %vm101 = vcmask 425232
    %s102 = scalar_lea.vmem [#allocation0], 1
    %103 = vst.msk [vmem:[%s102] sm:$0x1] %vm101, %v100
    %s104 = scalar_lea.vmem %s0, 16
    %v105 = vld [vmem:[%s104] sm:$0x1]
    %106 = vrot.lane.b32.xlu0 %v105, 32
    %v107 = vpop.permute.xlu0 %106
    %vm108 = vcmask 408832
    %s109 = scalar_lea.vmem [#allocation0], 2
    %110 = vst.msk [vmem:[%s109] sm:$0x1] %vm108, %v107
    %s111 = scalar_lea.vmem %s0, 1
    %v112 = vld [vmem:[%s111] sm:$0x1]
    %113 = vrot.lane.b32.xlu0 %v112, 18
    %v114 = vpop.permute.xlu0 %113
    %vm115 = vcmask 294032
    %116 = vst.msk [vmem:[#allocation0] sm:$0x1] %vm115, %v114
    %s117 = scalar_lea.vmem %s0, 8
    %v118 = vld [vmem:[%s117] sm:$0x1]
    %119 = vrot.lane.b32.xlu0 %v118, 16
    %v120 = vpop.permute.xlu0 %119
    %vm121 = vcmask 277632
    %s122 = scalar_lea.vmem [#allocation0], 1
    %123 = vst.msk [vmem:[%s122] sm:$0x1] %vm121, %v120
    %s124 = scalar_lea.vmem %s0, 15
    %v125 = vld [vmem:[%s124] sm:$0x1]
    %126 = vrot.lane.b32.xlu0 %v125, 14
    %v127 = vpop.permute.xlu0 %126
    %vm128 = vcmask 261232
    %s129 = scalar_lea.vmem [#allocation0], 2
    %130 = vst.msk [vmem:[%s129] sm:$0x1] %vm128, %v127
    %s132 = sshllo.u32 0, 4
    %v134 = vld [vmem:[#allocation0] sm:%s132]
    %s135 = sshllo.u32 0, 4
    %136 = vst [vmem:[%s1] sm:%s135] %v134

// kernel: tile.6
$region0: #{tile.6}
  #allocation0 [shape = 's32[1]{0}', space=sflag, size = 0x4, scoped, tag = 'scoped memory for tile.6']
  %s0 = inlined_call_operand.vmem [shape: f32[324], index: 0, kind: input, shape index: {}]
  %s1 = inlined_call_operand.vmem [shape: f32[2,324], index: 1, kind: output, shape index: {}]
  // Predicated region
  $region2: #{tile.6} parent=0 // pred_check
    _
  $region3: #{tile.6} parent=0 // pred_check_branch
    %3 = sbr.rel (0) target = $region5
  $region4: #{tile.6} parent=0 // pred_region
    _
  $region5: #{tile.6} parent=0 // pred_fallthru
    _
  %v4 = vld [vmem:[%s0] ss:$0 sm:$0xff]
  %5 = vst [vmem:[%s1] sm:$0x3] %v4
  %s6 = scalar_lea.vmem %s0, 1
  %v7 = vld [vmem:[%s6] ss:$0 sm:$0xff]
  %s8 = scalar_lea.vmem %s1, 2
  %9 = vst [vmem:[%s8] sm:$0x3] %v7
  %s10 = scalar_lea.vmem %s0, 2
  %v11 = vld [vmem:[%s10] ss:$0 sm:$0xff]
  %s12 = scalar_lea.vmem %s1, 4
  %13 = vst [vmem:[%s12] sm:$0x3] %v11

// kernel: tile.7
$region0: #{tile.7}
  %s0 = inlined_call_operand.vmem [shape: f32[2,324], index: 0, kind: input, shape index: {}]
  %s1 = inlined_call_operand.vmem [shape: f32[1,648], index: 1, kind: output, shape index: {}]
  $region1: #{tile.7} parent=0
    #allocation0 [shape = 'u8[24576]{0}', space=vmem, size = 0x6000, scoped, tag = 'scoped mem for output reshape']
    #allocation1 [shape = 'u8[12288]{0}', space=vmem, size = 0x3000, scoped, tag = 'scoped mem for input reshape']
    %s3 = sshllo.u32 0, 2
    %s4 = smul.addr 2, 2
    %s5 = scalar_lea.vmem %s0, %s4
    %v6 = vld [vmem:[%s5] sm:%s3]
    %s7 = scalar_lea.vmem [#allocation1], 16
    %8 = vst [vmem:[%s7] sm:%s3] %v6
    %s9 = scalar_lea.vmem %s0, 2
    %v10 = vld [vmem:[%s9] sm:%s3]
    %s11 = scalar_lea.vmem [#allocation1], 8
    %12 = vst [vmem:[%s11] sm:%s3] %v10
    %v13 = vld [vmem:[%s0] sm:%s3]
    %14 = vst [vmem:[#allocation1] sm:%s3] %v13
    %s15 = scalar_lea.vmem [#allocation1], 16
    %v16 = vld [vmem:[%s15] sm:$0x1]
    %vm17 = vcmask 556032
    %s18 = scalar_lea.vmem [#allocation0], 16
    %19 = vst.msk [vmem:[%s18] sm:$0x1] %vm17, %v16
    %s20 = smov 3
    %v21 = vld [vmem:[#allocation1] ss:$8 sm:%s20]
    %22 = vst [vmem:[#allocation0] ss:$8 sm:$0x3] %v21
    %s23 = scalar_lea.vmem [#allocation1], 17
    %v24 = vld [vmem:[%s23] sm:$0x1]
    %s25 = scalar_lea.vmem [#allocation1], 17
    %s26 = smov 3
    %v27 = vld [vmem:[%s25] ss:$-16 sm:%s26]
    %s28 = scalar_lea.vmem [#allocation1], 7
    %v29 = vld [vmem:[%s28] sm:$0x4]
    %vm30 = vcmask 1042434
    %v31 = vsel %vm30, %v29, %v27
    %vm32 = vcmask 490496
    %v33 = vsel %vm32, %v31, %v24
    %34 = vrot.lane.b32.xlu0 %v33, 68
    %v35 = vpop.permute.xlu0 %34
    %vm36 = vcmask 64512
    %s37 = scalar_lea.vmem [#allocation0], 40
    %38 = vst.msk [vmem:[%s37] sm:$0x1] %vm36, %v35
    %vm39 = vcmask 1048096
    %s40 = scalar_lea.vmem [#allocation0], 32
    %41 = vst.msk [vmem:[%s40] ss:$-16 sm:$0x3] %vm39, %v35
    %s42 = scalar_lea.vmem [#allocation0], 22
    %43 = vst.msk [vmem:[%s42] sm:$0x4] %vm39, %v35
    %s44 = scalar_lea.vmem [#allocation1], 9
    %s45 = smov 3
    %v46 = vld [vmem:[%s44] ss:$-8 sm:%s45]
    %47 = vrot.lane.b32.xlu0 %v46, 68
    %v48 = vpop.permute.xlu0 %47
    %vm49 = vcmask 556032
    %s50 = scalar_lea.vmem [#allocation0], 32
    %51 = vst.msk [vmem:[%s50] ss:$-8 sm:$0x3] %vm49, %v48
    %s53 = sshllo.u32 0, 1
    %v55 = vld [vmem:[#allocation0] sm:%s53]
    %s56 = sshllo.u32 0, 1
    %57 = vst [vmem:[%s1] sm:%s56] %v55
    %s58 = scalar_lea.vmem [#allocation0], 8
    %v59 = vld [vmem:[%s58] sm:%s53]
    %s60 = sshllo.u32 0, 1
    %s61 = scalar_lea.vmem %s1, 1
    %62 = vst [vmem:[%s61] sm:%s60] %v59
    %s63 = scalar_lea.vmem [#allocation0], 16
    %v64 = vld [vmem:[%s63] sm:%s53]
    %s65 = sshllo.u32 0, 1
    %s66 = smul.addr 1, 2
    %s67 = scalar_lea.vmem %s1, %s66
    %68 = vst [vmem:[%s67] sm:%s65] %v64
    %s69 = scalar_lea.vmem [#allocation0], 24
    %v70 = vld [vmem:[%s69] sm:%s53]
    %s71 = sshllo.u32 0, 1
    %s72 = smul.addr 1, 3
    %s73 = scalar_lea.vmem %s1, %s72
    %74 = vst [vmem:[%s73] sm:%s71] %v70
    %s75 = scalar_lea.vmem [#allocation0], 32
    %v76 = vld [vmem:[%s75] sm:%s53]
    %s77 = sshllo.u32 0, 1
    %s78 = smul.addr 1, 4
    %s79 = scalar_lea.vmem %s1, %s78
    %80 = vst [vmem:[%s79] sm:%s77] %v76
    %s81 = scalar_lea.vmem [#allocation0], 40
    %v82 = vld [vmem:[%s81] sm:%s53]
    %s83 = sshllo.u32 0, 1
    %s84 = smul.addr 1, 5
    %s85 = scalar_lea.vmem %s1, %s84
    %86 = vst [vmem:[%s85] sm:%s83] %v82

// kernel: ccr_block.1
$region0: #{ccr_block.1}
  #allocation0 [shape = 'u32[]', space=smem, size = 0x4, offset = 0x4, fixed_abs, tag = 'smem constant byte address 0x4 - core index']
  #allocation1 [shape = 'u32[144,128]{1,0:T(1,128)}', space=vmem, size = 0x12000, scoped, tag = 'internal scratch']
  #allocation2 [shape = 'f32[72,648]{1,0:T(8,128)}', space=vmem, size = 0x36000, scoped, tag = 'scratch operand']
  #allocation3 [shape = 'f32[8,904]{1,0:T(8,128)}', space=vmem, size = 0x8000, scoped, tag = 'scratch operand']
  #allocation4 [shape = 'f32[1,1]{1,0:T(1,128)S(6)}', space=smem, size = 0x200, scoped, tag = 'scoped memory for ccr_block.1']
  #allocation5 [shape = 'f32[1,1]{1,0:T(1,128)S(6)}', space=smem, size = 0x200, scoped, tag = 'scoped memory for ccr_block.1']
  %s0 = inlined_call_operand.vmem [shape: f32[8,904], index: 0, kind: input, shape index: {}]
  %s1 = inlined_call_operand.vmem [shape: f32[1,648], index: 1, kind: input, shape index: {}]
  %s2 = inlined_call_operand.vmem [shape: f32[8,8], index: 2, kind: input, shape index: {}]
  %s3 = inlined_call_operand.vmem [shape: f32[8,1], index: 3, kind: input, shape index: {}]
  %s4 = inlined_call_operand.vmem [shape: f32[8,72], index: 4, kind: input, shape index: {}]
  %s5 = inlined_call_operand.vmem [shape: f32[8,1], index: 5, kind: input, shape index: {}]
  %s6 = inlined_call_operand.<no memory space> [shape: f32[1,1], index: 6, kind: input, shape index: {}]
  %s7 = inlined_call_operand.vmem [shape: f32[8,72], index: 7, kind: input, shape index: {}]
  %s8 = inlined_call_operand.vmem [shape: f32[8,1], index: 8, kind: input, shape index: {}]
  %s9 = inlined_call_operand.<no memory space> [shape: f32[1,1], index: 9, kind: input, shape index: {}]
  %s10 = inlined_call_operand.vmem [shape: f32[8,648], index: 10, kind: output, shape index: {}]
  %s11 = sld [smem:[#allocation0]]
  $region50: #{ccr_block.1} parent=0
    _
  %s13 = ssub.s32 1, %s11
  %s14 = scalar_select 0, %s13, %s11
  %15 = sst [smem:[#allocation4]] %s6
  %16 = sst [smem:[#allocation5]] %s9
  // Predicated region
  $region2: #{ccr_block.1} parent=0 // pred_check
    _
  $region3: #{ccr_block.1} parent=0 // pred_check_branch
    %18 = sbr.rel (0) target = $region5
  $region4: #{ccr_block.1} parent=0 // pred_region
    _
  $region5: #{ccr_block.1} parent=0 // pred_fallthru
    _
  // Predicated region
  $region6: #{ccr_block.1} parent=0 // pred_check
    _
  $region7: #{ccr_block.1} parent=0 // pred_check_branch
    %20 = sbr.rel (0) target = $region9
  $region8: #{ccr_block.1} parent=0 // pred_region
    _
  $region9: #{ccr_block.1} parent=0 // pred_fallthru
    _
  // Predicated region
  $region10: #{ccr_block.1} parent=0 // pred_check
    _
  $region11: #{ccr_block.1} parent=0 // pred_check_branch
    %22 = sbr.rel (0) target = $region13
  $region12: #{ccr_block.1} parent=0 // pred_region
    _
  $region13: #{ccr_block.1} parent=0 // pred_fallthru
    _
  // Predicated region
  $region14: #{ccr_block.1} parent=0 // pred_check
    _
  $region15: #{ccr_block.1} parent=0 // pred_check_branch
    %24 = sbr.rel (0) target = $region17
  $region16: #{ccr_block.1} parent=0 // pred_region
    _
  $region17: #{ccr_block.1} parent=0 // pred_fallthru
    _
  // Predicated region
  $region18: #{ccr_block.1} parent=0 // pred_check
    _
  $region19: #{ccr_block.1} parent=0 // pred_check_branch
    %26 = sbr.rel (0) target = $region21
  $region20: #{ccr_block.1} parent=0 // pred_region
    _
  $region21: #{ccr_block.1} parent=0 // pred_fallthru
    _
  // Predicated region
  $region22: #{ccr_block.1} parent=0 // pred_check
    _
  $region23: #{ccr_block.1} parent=0 // pred_check_branch
    %28 = sbr.rel (0) target = $region25
  $region24: #{ccr_block.1} parent=0 // pred_region
    _
  $region25: #{ccr_block.1} parent=0 // pred_fallthru
    _
  // Predicated region
  $region26: #{ccr_block.1} parent=0 // pred_check
    _
  $region27: #{ccr_block.1} parent=0 // pred_check_branch
    %30 = sbr.rel (0) target = $region29
  $region28: #{ccr_block.1} parent=0 // pred_region
    _
  $region29: #{ccr_block.1} parent=0 // pred_fallthru
    _
  // Predicated region
  $region30: #{ccr_block.1} parent=0 // pred_check
    _
  $region31: #{ccr_block.1} parent=0 // pred_check_branch
    %32 = sbr.rel (0) target = $region33
  $region32: #{ccr_block.1} parent=0 // pred_region
    _
  $region33: #{ccr_block.1} parent=0 // pred_fallthru
    _
  // Predicated region
  $region34: #{ccr_block.1} parent=0 // pred_check
    _
  $region35: #{ccr_block.1} parent=0 // pred_check_branch
    %34 = sbr.rel (0) target = $region37
  $region36: #{ccr_block.1} parent=0 // pred_region
    _
  $region37: #{ccr_block.1} parent=0 // pred_fallthru
    _
  // Predicated region
  $region38: #{ccr_block.1} parent=0 // pred_check
    _
  $region39: #{ccr_block.1} parent=0 // pred_check_branch
    %36 = sbr.rel (0) target = $region41
  $region40: #{ccr_block.1} parent=0 // pred_region
    _
  $region41: #{ccr_block.1} parent=0 // pred_fallthru
    _
  %v37 = vld [vmem:[%s1] sm:$0x3f]
  %v38 = vld [vmem:[%s0] sm:$0xff]
  %v39 = vld [vmem:[%s0 + $0x8] sm:$0xff]
  %v40 = vld [vmem:[%s0 + $0x10] sm:$0xff]
  %v41 = vld [vmem:[%s0 + $0x18] sm:$0xff]
  %v42 = vld [vmem:[%s0 + $0x20] sm:$0xff]
  %v43 = vld [vmem:[%s0 + $0x28] sm:$0xff]
  %50 = vrot.lane.b32.xlu0 %v38, 19
  %v51 = vpop.permute.xlu0 %50
  %52 = vrot.lane.b32.xlu0 %v39, 19
  %v53 = vpop.permute.xlu0 %52
  %54 = vrot.lane.b32.xlu0 %v40, 19
  %v55 = vpop.permute.xlu0 %54
  %56 = vrot.lane.b32.xlu0 %v41, 19
  %v57 = vpop.permute.xlu0 %56
  %58 = vrot.lane.b32.xlu0 %v42, 19
  %v59 = vpop.permute.xlu0 %58
  %60 = vrot.lane.b32.xlu0 %v43, 19
  %v61 = vpop.permute.xlu0 %60
  %vm62 = vcmask 154624
  %v63 = vsel %vm62, %v51, %v53
  %v64 = vsel %vm62, %v53, %v55
  %v65 = vsel %vm62, %v55, %v57
  %v66 = vsel %vm62, %v57, %v59
  %v67 = vsel %vm62, %v59, %v61
  %74 = vst [vmem:[#allocation2] sm:$0xff] %v63
  %75 = vst [vmem:[#allocation2 + $0x8] sm:$0xff] %v64
  %76 = vst [vmem:[#allocation2 + $0x10] sm:$0xff] %v65
  %77 = vst [vmem:[#allocation2 + $0x18] sm:$0xff] %v66
  %78 = vst [vmem:[#allocation2 + $0x20] sm:$0xff] %v67
  %vm79 = vcmask 64512
  %80 = vst.msk [vmem:[#allocation2 + $0x28] sm:$0xff] %vm79, %v61
  %v81 = vld [vmem:[%s0] sm:$0xff]
  %v82 = vld [vmem:[%s0 + $0x8] sm:$0xff]
  %v83 = vld [vmem:[%s0 + $0x10] sm:$0xff]
  %v84 = vld [vmem:[%s0 + $0x18] sm:$0xff]
  %v85 = vld [vmem:[%s0 + $0x20] sm:$0xff]
  %v86 = vld [vmem:[%s0 + $0x28] sm:$0xff]
  %93 = vrot.lane.b32.xlu0 %v81, 18
  %v94 = vpop.permute.xlu0 %93
  %95 = vrot.lane.b32.xlu0 %v82, 18
  %v96 = vpop.permute.xlu0 %95
  %97 = vrot.lane.b32.xlu0 %v83, 18
  %v98 = vpop.permute.xlu0 %97
  %99 = vrot.lane.b32.xlu0 %v84, 18
  %v100 = vpop.permute.xlu0 %99
  %101 = vrot.lane.b32.xlu0 %v85, 18
  %v102 = vpop.permute.xlu0 %101
  %103 = vrot.lane.b32.xlu0 %v86, 18
  %v104 = vpop.permute.xlu0 %103
  %vm105 = vcmask 146432
  %v106 = vsel %vm105, %v94, %v96
  %v107 = vsel %vm105, %v96, %v98
  %v108 = vsel %vm105, %v98, %v100
  %v109 = vsel %vm105, %v100, %v102
  %v110 = vsel %vm105, %v102, %v104
  %117 = vst [vmem:[#allocation2 + $0x30] sm:$0xff] %v106
  %118 = vst [vmem:[#allocation2 + $0x38] sm:$0xff] %v107
  %119 = vst [vmem:[#allocation2 + $0x40] sm:$0xff] %v108
  %120 = vst [vmem:[#allocation2 + $0x48] sm:$0xff] %v109
  %121 = vst [vmem:[#allocation2 + $0x50] sm:$0xff] %v110
  %122 = vst.msk [vmem:[#allocation2 + $0x58] sm:$0xff] %vm79, %v104
  %v123 = vld [vmem:[%s0] sm:$0xff]
  %v124 = vld [vmem:[%s0 + $0x8] sm:$0xff]
  %v125 = vld [vmem:[%s0 + $0x10] sm:$0xff]
  %v126 = vld [vmem:[%s0 + $0x18] sm:$0xff]
  %v127 = vld [vmem:[%s0 + $0x20] sm:$0xff]
  %v128 = vld [vmem:[%s0 + $0x28] sm:$0xff]
  %135 = vrot.lane.b32.xlu0 %v123, 17
  %v136 = vpop.permute.xlu0 %135
  %137 = vrot.lane.b32.xlu0 %v124, 17
  %v138 = vpop.permute.xlu0 %137
  %139 = vrot.lane.b32.xlu0 %v125, 17
  %v140 = vpop.permute.xlu0 %139
  %141 = vrot.lane.b32.xlu0 %v126, 17
  %v142 = vpop.permute.xlu0 %141
  %143 = vrot.lane.b32.xlu0 %v127, 17
  %v144 = vpop.permute.xlu0 %143
  %145 = vrot.lane.b32.xlu0 %v128, 17
  %v146 = vpop.permute.xlu0 %145
  %vm147 = vcmask 138240
  %v148 = vsel %vm147, %v136, %v138
  %v149 = vsel %vm147, %v138, %v140
  %v150 = vsel %vm147, %v140, %v142
  %v151 = vsel %vm147, %v142, %v144
  %v152 = vsel %vm147, %v144, %v146
  %159 = vst [vmem:[#allocation2 + $0x60] sm:$0xff] %v148
  %160 = vst [vmem:[#allocation2 + $0x68] sm:$0xff] %v149
  %161 = vst [vmem:[#allocation2 + $0x70] sm:$0xff] %v150
  %162 = vst [vmem:[#allocation2 + $0x78] sm:$0xff] %v151
  %163 = vst [vmem:[#allocation2 + $0x80] sm:$0xff] %v152
  %164 = vst.msk [vmem:[#allocation2 + $0x88] sm:$0xff] %vm79, %v146
  %v165 = vld [vmem:[%s0] sm:$0xff]
  %v166 = vld [vmem:[%s0 + $0x8] sm:$0xff]
  %v167 = vld [vmem:[%s0 + $0x10] sm:$0xff]
  %v168 = vld [vmem:[%s0 + $0x18] sm:$0xff]
  %v169 = vld [vmem:[%s0 + $0x20] sm:$0xff]
  %v170 = vld [vmem:[%s0 + $0x28] sm:$0xff]
  %v171 = vld [vmem:[%s0 + $0x30] sm:$0xff]
  %179 = vrot.lane.b32.xlu0 %v165, 1
  %v180 = vpop.permute.xlu0 %179
  %181 = vrot.lane.b32.xlu0 %v166, 1
  %v182 = vpop.permute.xlu0 %181
  %183 = vrot.lane.b32.xlu0 %v167, 1
  %v184 = vpop.permute.xlu0 %183
  %185 = vrot.lane.b32.xlu0 %v168, 1
  %v186 = vpop.permute.xlu0 %185
  %187 = vrot.lane.b32.xlu0 %v169, 1
  %v188 = vpop.permute.xlu0 %187
  %189 = vrot.lane.b32.xlu0 %v170, 1
  %v190 = vpop.permute.xlu0 %189
  %191 = vrot.lane.b32.xlu0 %v171, 1
  %v192 = vpop.permute.xlu0 %191
  %vm193 = vcmask 7168
  %v194 = vsel %vm193, %v180, %v182
  %v195 = vsel %vm193, %v182, %v184
  %v196 = vsel %vm193, %v184, %v186
  %v197 = vsel %vm193, %v186, %v188
  %v198 = vsel %vm193, %v188, %v190
  %v199 = vsel %vm193, %v190, %v192
  %206 = vst [vmem:[#allocation2 + $0x90] sm:$0xff] %v194
  %207 = vst [vmem:[#allocation2 + $0x98] sm:$0xff] %v195
  %208 = vst [vmem:[#allocation2 + $0xa0] sm:$0xff] %v196
  %209 = vst [vmem:[#allocation2 + $0xa8] sm:$0xff] %v197
  %210 = vst [vmem:[#allocation2 + $0xb0] sm:$0xff] %v198
  %211 = vst.msk [vmem:[#allocation2 + $0xb8] sm:$0xff] %vm79, %v199
  %v212 = vld [vmem:[%s0 + $0x8] sm:$0xff]
  %v213 = vld [vmem:[%s0 + $0x10] sm:$0xff]
  %v214 = vld [vmem:[%s0 + $0x18] sm:$0xff]
  %v215 = vld [vmem:[%s0 + $0x20] sm:$0xff]
  %v216 = vld [vmem:[%s0 + $0x28] sm:$0xff]
  %v217 = vld [vmem:[%s0 + $0x30] sm:$0xff]
  %218 = vst [vmem:[#allocation2 + $0xc0] sm:$0xff] %v212
  %219 = vst [vmem:[#allocation2 + $0xc8] sm:$0xff] %v213
  %220 = vst [vmem:[#allocation2 + $0xd0] sm:$0xff] %v214
  %221 = vst [vmem:[#allocation2 + $0xd8] sm:$0xff] %v215
  %222 = vst [vmem:[#allocation2 + $0xe0] sm:$0xff] %v216
  %223 = vst.msk [vmem:[#allocation2 + $0xe8] sm:$0xff] %vm79, %v217
  %v224 = vld [vmem:[%s0 + $0x8] sm:$0xff]
  %v225 = vld [vmem:[%s0 + $0x10] sm:$0xff]
  %v226 = vld [vmem:[%s0 + $0x18] sm:$0xff]
  %v227 = vld [vmem:[%s0 + $0x20] sm:$0xff]
  %v228 = vld [vmem:[%s0 + $0x28] sm:$0xff]
  %v229 = vld [vmem:[%s0 + $0x30] sm:$0xff]
  %236 = vrot.lane.b32.xlu0 %v224, 127
  %v237 = vpop.permute.xlu0 %236
  %238 = vrot.lane.b32.xlu0 %v225, 127
  %v239 = vpop.permute.xlu0 %238
  %240 = vrot.lane.b32.xlu0 %v226, 127
  %v241 = vpop.permute.xlu0 %240
  %242 = vrot.lane.b32.xlu0 %v227, 127
  %v243 = vpop.permute.xlu0 %242
  %244 = vrot.lane.b32.xlu0 %v228, 127
  %v245 = vpop.permute.xlu0 %244
  %246 = vrot.lane.b32.xlu0 %v229, 127
  %v247 = vpop.permute.xlu0 %246
  %vm248 = vcmask 1039360
  %v249 = vsel %vm248, %v237, %v239
  %v250 = vsel %vm248, %v239, %v241
  %v251 = vsel %vm248, %v241, %v243
  %v252 = vsel %vm248, %v243, %v245
  %v253 = vsel %vm248, %v245, %v247
  %260 = vst [vmem:[#allocation2 + $0xf0] sm:$0xff] %v249
  %261 = vst [vmem:[#allocation2 + $0xf8] sm:$0xff] %v250
  %262 = vst [vmem:[#allocation2 + $0x100] sm:$0xff] %v251
  %263 = vst [vmem:[#allocation2 + $0x108] sm:$0xff] %v252
  %264 = vst [vmem:[#allocation2 + $0x110] sm:$0xff] %v253
  %265 = vst.msk [vmem:[#allocation2 + $0x118] sm:$0xff] %vm79, %v247
  %v266 = vld [vmem:[%s0 + $0x8] sm:$0xff]
  %v267 = vld [vmem:[%s0 + $0x10] sm:$0xff]
  %v268 = vld [vmem:[%s0 + $0x18] sm:$0xff]
  %v269 = vld [vmem:[%s0 + $0x20] sm:$0xff]
  %v270 = vld [vmem:[%s0 + $0x28] sm:$0xff]
  %v271 = vld [vmem:[%s0 + $0x30] sm:$0xff]
  %278 = vrot.lane.b32.xlu0 %v266, 111
  %v279 = vpop.permute.xlu0 %278
  %280 = vrot.lane.b32.xlu0 %v267, 111
  %v281 = vpop.permute.xlu0 %280
  %282 = vrot.lane.b32.xlu0 %v268, 111
  %v283 = vpop.permute.xlu0 %282
  %284 = vrot.lane.b32.xlu0 %v269, 111
  %v285 = vpop.permute.xlu0 %284
  %286 = vrot.lane.b32.xlu0 %v270, 111
  %v287 = vpop.permute.xlu0 %286
  %288 = vrot.lane.b32.xlu0 %v271, 111
  %v289 = vpop.permute.xlu0 %288
  %vm290 = vcmask 908288
  %v291 = vsel %vm290, %v279, %v281
  %v292 = vsel %vm290, %v281, %v283
  %v293 = vsel %vm290, %v283, %v285
  %v294 = vsel %vm290, %v285, %v287
  %v295 = vsel %vm290, %v287, %v289
  %302 = vst [vmem:[#allocation2 + $0x120] sm:$0xff] %v291
  %303 = vst [vmem:[#allocation2 + $0x128] sm:$0xff] %v292
  %304 = vst [vmem:[#allocation2 + $0x130] sm:$0xff] %v293
  %305 = vst [vmem:[#allocation2 + $0x138] sm:$0xff] %v294
  %306 = vst [vmem:[#allocation2 + $0x140] sm:$0xff] %v295
  %307 = vst.msk [vmem:[#allocation2 + $0x148] sm:$0xff] %vm79, %v289
  %v308 = vld [vmem:[%s0 + $0x8] sm:$0xff]
  %v309 = vld [vmem:[%s0 + $0x10] sm:$0xff]
  %v310 = vld [vmem:[%s0 + $0x18] sm:$0xff]
  %v311 = vld [vmem:[%s0 + $0x20] sm:$0xff]
  %v312 = vld [vmem:[%s0 + $0x28] sm:$0xff]
  %v313 = vld [vmem:[%s0 + $0x30] sm:$0xff]
  %320 = vrot.lane.b32.xlu0 %v308, 110
  %v321 = vpop.permute.xlu0 %320
  %322 = vrot.lane.b32.xlu0 %v309, 110
  %v323 = vpop.permute.xlu0 %322
  %324 = vrot.lane.b32.xlu0 %v310, 110
  %v325 = vpop.permute.xlu0 %324
  %326 = vrot.lane.b32.xlu0 %v311, 110
  %v327 = vpop.permute.xlu0 %326
  %328 = vrot.lane.b32.xlu0 %v312, 110
  %v329 = vpop.permute.xlu0 %328
  %330 = vrot.lane.b32.xlu0 %v313, 110
  %v331 = vpop.permute.xlu0 %330
  %vm332 = vcmask 900096
  %v333 = vsel %vm332, %v321, %v323
  %v334 = vsel %vm332, %v323, %v325
  %v335 = vsel %vm332, %v325, %v327
  %v336 = vsel %vm332, %v327, %v329
  %v337 = vsel %vm332, %v329, %v331
  %344 = vst [vmem:[#allocation2 + $0x150] sm:$0xff] %v333
  %345 = vst [vmem:[#allocation2 + $0x158] sm:$0xff] %v334
  %346 = vst [vmem:[#allocation2 + $0x160] sm:$0xff] %v335
  %347 = vst [vmem:[#allocation2 + $0x168] sm:$0xff] %v336
  %348 = vst [vmem:[#allocation2 + $0x170] sm:$0xff] %v337
  %349 = vst.msk [vmem:[#allocation2 + $0x178] sm:$0xff] %vm79, %v331
  %v350 = vld [vmem:[%s0 + $0x8] sm:$0xff]
  %v351 = vld [vmem:[%s0 + $0x10] sm:$0xff]
  %v352 = vld [vmem:[%s0 + $0x18] sm:$0xff]
  %v353 = vld [vmem:[%s0 + $0x20] sm:$0xff]
  %v354 = vld [vmem:[%s0 + $0x28] sm:$0xff]
  %v355 = vld [vmem:[%s0 + $0x30] sm:$0xff]
  %362 = vrot.lane.b32.xlu0 %v350, 109
  %v363 = vpop.permute.xlu0 %362
  %364 = vrot.lane.b32.xlu0 %v351, 109
  %v365 = vpop.permute.xlu0 %364
  %366 = vrot.lane.b32.xlu0 %v352, 109
  %v367 = vpop.permute.xlu0 %366
  %368 = vrot.lane.b32.xlu0 %v353, 109
  %v369 = vpop.permute.xlu0 %368
  %370 = vrot.lane.b32.xlu0 %v354, 109
  %v371 = vpop.permute.xlu0 %370
  %372 = vrot.lane.b32.xlu0 %v355, 109
  %v373 = vpop.permute.xlu0 %372
  %vm374 = vcmask 891904
  %v375 = vsel %vm374, %v363, %v365
  %v376 = vsel %vm374, %v365, %v367
  %v377 = vsel %vm374, %v367, %v369
  %v378 = vsel %vm374, %v369, %v371
  %v379 = vsel %vm374, %v371, %v373
  %386 = vst [vmem:[#allocation2 + $0x180] sm:$0xff] %v375
  %387 = vst [vmem:[#allocation2 + $0x188] sm:$0xff] %v376
  %388 = vst [vmem:[#allocation2 + $0x190] sm:$0xff] %v377
  %389 = vst [vmem:[#allocation2 + $0x198] sm:$0xff] %v378
  %390 = vst [vmem:[#allocation2 + $0x1a0] sm:$0xff] %v379
  %391 = vst.msk [vmem:[#allocation2 + $0x1a8] sm:$0xff] %vm79, %v373
  %v392 = vld [vmem:[%s4] sm:$0xff]
  %v393 = vld [vmem:[#allocation2] sm:$0xff]
  %v394 = vld [vmem:[#allocation2 + $0x8] sm:$0xff]
  %v395 = vld [vmem:[#allocation2 + $0x10] sm:$0xff]
  %v396 = vld [vmem:[#allocation2 + $0x18] sm:$0xff]
  %v397 = vld [vmem:[#allocation2 + $0x20] sm:$0xff]
  %v398 = vld [vmem:[#allocation2 + $0x28] sm:$0xff]
  %v399 = vld [vmem:[#allocation2 + $0x30] sm:$0xff]
  %v400 = vld [vmem:[#allocation2 + $0x38] sm:$0xff]
  %v401 = vld [vmem:[#allocation2 + $0x40] sm:$0xff]
  %v402 = vld [vmem:[#allocation2 + $0x48] sm:$0xff]
  %v403 = vld [vmem:[#allocation2 + $0x50] sm:$0xff]
  %v404 = vld [vmem:[#allocation2 + $0x58] sm:$0xff]
  %v405 = vld [vmem:[#allocation2 + $0x60] sm:$0xff]
  %v406 = vld [vmem:[#allocation2 + $0x68] sm:$0xff]
  %v407 = vld [vmem:[#allocation2 + $0x70] sm:$0xff]
  %v408 = vld [vmem:[#allocation2 + $0x78] sm:$0xff]
  %v409 = vld [vmem:[#allocation2 + $0x80] sm:$0xff]
  %v410 = vld [vmem:[#allocation2 + $0x88] sm:$0xff]
  %v411 = vld [vmem:[#allocation2 + $0x90] sm:$0xff]
  %v412 = vld [vmem:[#allocation2 + $0x98] sm:$0xff]
  %v413 = vld [vmem:[#allocation2 + $0xa0] sm:$0xff]
  %v414 = vld [vmem:[#allocation2 + $0xa8] sm:$0xff]
  %v415 = vld [vmem:[#allocation2 + $0xb0] sm:$0xff]
  %v416 = vld [vmem:[#allocation2 + $0xb8] sm:$0xff]
  %v417 = vld [vmem:[#allocation2 + $0xc0] sm:$0xff]
  %v418 = vld [vmem:[#allocation2 + $0xc8] sm:$0xff]
  %v419 = vld [vmem:[#allocation2 + $0xd0] sm:$0xff]
  %v420 = vld [vmem:[#allocation2 + $0xd8] sm:$0xff]
  %v421 = vld [vmem:[#allocation2 + $0xe0] sm:$0xff]
  %v422 = vld [vmem:[#allocation2 + $0xe8] sm:$0xff]
  %v423 = vld [vmem:[#allocation2 + $0xf0] sm:$0xff]
  %v424 = vld [vmem:[#allocation2 + $0xf8] sm:$0xff]
  %v425 = vld [vmem:[#allocation2 + $0x100] sm:$0xff]
  %v426 = vld [vmem:[#allocation2 + $0x108] sm:$0xff]
  %v427 = vld [vmem:[#allocation2 + $0x110] sm:$0xff]
  %v428 = vld [vmem:[#allocation2 + $0x118] sm:$0xff]
  %v429 = vld [vmem:[#allocation2 + $0x120] sm:$0xff]
  %v430 = vld [vmem:[#allocation2 + $0x128] sm:$0xff]
  %v431 = vld [vmem:[#allocation2 + $0x130] sm:$0xff]
  %v432 = vld [vmem:[#allocation2 + $0x138] sm:$0xff]
  %v433 = vld [vmem:[#allocation2 + $0x140] sm:$0xff]
  %v434 = vld [vmem:[#allocation2 + $0x148] sm:$0xff]
  %v435 = vld [vmem:[#allocation2 + $0x150] sm:$0xff]
  %v436 = vld [vmem:[#allocation2 + $0x158] sm:$0xff]
  %v437 = vld [vmem:[#allocation2 + $0x160] sm:$0xff]
  %v438 = vld [vmem:[#allocation2 + $0x168] sm:$0xff]
  %v439 = vld [vmem:[#allocation2 + $0x170] sm:$0xff]
  %v440 = vld [vmem:[#allocation2 + $0x178] sm:$0xff]
  %v441 = vld [vmem:[#allocation2 + $0x180] sm:$0xff]
  %v442 = vld [vmem:[#allocation2 + $0x188] sm:$0xff]
  %v443 = vld [vmem:[#allocation2 + $0x190] sm:$0xff]
  %v444 = vld [vmem:[#allocation2 + $0x198] sm:$0xff]
  %v445 = vld [vmem:[#allocation2 + $0x1a0] sm:$0xff]
  %v446 = vld [vmem:[#allocation2 + $0x1a8] sm:$0xff]
  %v447 = vld [vmem:[%s5] sm:$0xff]
  %449 = vset.pattern.permute.xlu0 0
  %450 = vperm.xlu0 %449, %v447
  %v451 = vpop.permute.xlu0 %450
  %vm453 = vcmask 588800
  %v455 = vsel %vm453, %v392, 0
  %457 = vmatprep.subr.mxu0 %v394
  %458 = vmatpush1.msra.mxu0 %v393
  %459 = vmatprep.subr.mxu0 %v400
  %460 = vmatpush1.msra.mxu0 %v399
  %461 = vmatprep.subr.mxu0 %v406
  %462 = vmatpush1.msra.mxu0 %v405
  %463 = vmatprep.subr.mxu0 %v412
  %464 = vmatpush1.msra.mxu0 %v411
  %465 = vmatprep.subr.mxu0 %v418
  %466 = vmatpush1.msra.mxu0 %v417
  %467 = vmatprep.subr.mxu0 %v424
  %468 = vmatpush1.msra.mxu0 %v423
  %469 = vmatprep.subr.mxu0 %v430
  %470 = vmatpush1.msra.mxu0 %v429
  %471 = vmatprep.subr.mxu0 %v436
  %472 = vmatpush1.msra.mxu0 %v435
  %473 = vmatprep.subr.mxu0 %v442
  %474 = vmatpush1.msra.mxu0 %v441
  %475 = vmatprep.subr.mxu0 0.0
  %476 = vmatpush1.msra.mxu0 0.0
  %477 = vmatprep.subr.mxu0 0.0
  %478 = vmatpush1.msra.mxu0 0.0
  %479 = vmatprep.subr.mxu0 0.0
  %480 = vmatpush1.msra.mxu0 0.0
  %481 = vmatprep.subr.mxu0 0.0
  %482 = vmatpush1.msra.mxu0 0.0
  %483 = vmatprep.subr.mxu0 0.0
  %484 = vmatpush1.msra.mxu0 0.0
  %485 = vmatprep.subr.mxu0 0.0
  %486 = vmatpush1.msra.mxu0 0.0
  %487 = vmatprep.subr.mxu0 0.0
  %488 = vmatpush1.msra.mxu0 0.0
  %489 = vmatprep.subr.mxu0 0.0
  %490 = vmatpush1.msra.mxu0 0.0
  %491 = vmatprep.subr.mxu0 0.0
  %492 = vmatpush1.msra.mxu0 0.0
  %493 = vmatprep.subr.mxu0 0.0
  %494 = vmatpush1.msra.mxu0 0.0
  %495 = vmatprep.subr.mxu0 0.0
  %496 = vmatpush1.msra.mxu0 0.0
  %497 = vmatprep.subr.mxu0 0.0
  %498 = vmatpush1.msra.mxu0 0.0
  %499 = vmatprep.subr.mxu0 0.0
  %500 = vmatpush1.msra.mxu0 0.0
  %501 = vmatprep.subr.mxu0 0.0
  %502 = vmatpush1.msra.mxu0 0.0
  %503 = vmatprep.subr.mxu0 0.0
  %504 = vmatpush1.msra.mxu0 0.0
  %505 = vmatprep.subr.mxu0 0.0
  %506 = vmatpush1.msra.mxu0 0.0
  %507 = vmatprep.subr.mxu0 0.0
  %508 = vmatpush1.msra.mxu0 0.0
  %509 = vmatprep.subr.mxu0 0.0
  %510 = vmatpush1.msra.mxu0 0.0
  %511 = vmatprep.subr.mxu0 0.0
  %512 = vmatpush1.msra.mxu0 0.0
  %513 = vmatprep.subr.mxu0 0.0
  %514 = vmatpush1.msra.mxu0 0.0
  %515 = vmatprep.subr.mxu0 0.0
  %516 = vmatpush1.msra.mxu0 0.0
  %517 = vmatprep.subr.mxu0 0.0
  %518 = vmatpush1.msra.mxu0 0.0
  %519 = vmatprep.subr.mxu0 0.0
  %520 = vmatpush1.msra.mxu0 0.0
  %521 = vmatprep.mubr.f32.mxu0 0.0
  %522 = vmatmul.mubr.f32.gmra.mrb[0].mxu0 %v455
  %v523 = vpop.f32.mrb[0].mxu0
  %v524 = vadd.f32 %v451, %v523
  %v525 = vpop.f32.mrb[0].mxu0
  %v526 = vadd.f32 %v451, %v525
  %527 = vdwg.mxu0
  %528 = vmatprep.subr.mxu0 %v396
  %529 = vmatpush1.msra.mxu0 %v395
  %530 = vmatprep.subr.mxu0 %v402
  %531 = vmatpush1.msra.mxu0 %v401
  %532 = vmatprep.subr.mxu0 %v408
  %533 = vmatpush1.msra.mxu0 %v407
  %534 = vmatprep.subr.mxu0 %v414
  %535 = vmatpush1.msra.mxu0 %v413
  %536 = vmatprep.subr.mxu0 %v420
  %537 = vmatpush1.msra.mxu0 %v419
  %538 = vmatprep.subr.mxu0 %v426
  %539 = vmatpush1.msra.mxu0 %v425
  %540 = vmatprep.subr.mxu0 %v432
  %541 = vmatpush1.msra.mxu0 %v431
  %542 = vmatprep.subr.mxu0 %v438
  %543 = vmatpush1.msra.mxu0 %v437
  %544 = vmatprep.subr.mxu0 %v444
  %545 = vmatpush1.msra.mxu0 %v443
  %546 = vmatprep.subr.mxu0 0.0
  %547 = vmatpush1.msra.mxu0 0.0
  %548 = vmatprep.subr.mxu0 0.0
  %549 = vmatpush1.msra.mxu0 0.0
  %550 = vmatprep.subr.mxu0 0.0
  %551 = vmatpush1.msra.mxu0 0.0
  %552 = vmatprep.subr.mxu0 0.0
  %553 = vmatpush1.msra.mxu0 0.0
  %554 = vmatprep.subr.mxu0 0.0
  %555 = vmatpush1.msra.mxu0 0.0
  %556 = vmatprep.subr.mxu0 0.0
  %557 = vmatpush1.msra.mxu0 0.0
  %558 = vmatprep.subr.mxu0 0.0
  %559 = vmatpush1.msra.mxu0 0.0
  %560 = vmatprep.subr.mxu0 0.0
  %561 = vmatpush1.msra.mxu0 0.0
  %562 = vmatprep.subr.mxu0 0.0
  %563 = vmatpush1.msra.mxu0 0.0
  %564 = vmatprep.subr.mxu0 0.0
  %565 = vmatpush1.msra.mxu0 0.0
  %566 = vmatprep.subr.mxu0 0.0
  %567 = vmatpush1.msra.mxu0 0.0
  %568 = vmatprep.subr.mxu0 0.0
  %569 = vmatpush1.msra.mxu0 0.0
  %570 = vmatprep.subr.mxu0 0.0
  %571 = vmatpush1.msra.mxu0 0.0
  %572 = vmatprep.subr.mxu0 0.0
  %573 = vmatpush1.msra.mxu0 0.0
  %574 = vmatprep.subr.mxu0 0.0
  %575 = vmatpush1.msra.mxu0 0.0
  %576 = vmatprep.subr.mxu0 0.0
  %577 = vmatpush1.msra.mxu0 0.0
  %578 = vmatprep.subr.mxu0 0.0
  %579 = vmatpush1.msra.mxu0 0.0
  %580 = vmatprep.subr.mxu0 0.0
  %581 = vmatpush1.msra.mxu0 0.0
  %582 = vmatprep.subr.mxu0 0.0
  %583 = vmatpush1.msra.mxu0 0.0
  %584 = vmatprep.subr.mxu0 0.0
  %585 = vmatpush1.msra.mxu0 0.0
  %586 = vmatprep.subr.mxu0 0.0
  %587 = vmatpush1.msra.mxu0 0.0
  %588 = vmatprep.subr.mxu0 0.0
  %589 = vmatpush1.msra.mxu0 0.0
  %590 = vmatprep.subr.mxu0 0.0
  %591 = vmatpush1.msra.mxu0 0.0
  %592 = vmatprep.mubr.f32.mxu0 0.0
  %593 = vmatmul.mubr.f32.gmra.mrb[0].mxu0 %v455
  %v594 = vpop.f32.mrb[0].mxu0
  %v595 = vadd.f32 %v451, %v594
  %v596 = vpop.f32.mrb[0].mxu0
  %v597 = vadd.f32 %v451, %v596
  %598 = vdwg.mxu0
  %599 = vmatprep.subr.mxu0 %v398
  %600 = vmatpush1.msra.mxu0 %v397
  %601 = vmatprep.subr.mxu0 %v404
  %602 = vmatpush1.msra.mxu0 %v403
  %603 = vmatprep.subr.mxu0 %v410
  %604 = vmatpush1.msra.mxu0 %v409
  %605 = vmatprep.subr.mxu0 %v416
  %606 = vmatpush1.msra.mxu0 %v415
  %607 = vmatprep.subr.mxu0 %v422
  %608 = vmatpush1.msra.mxu0 %v421
  %609 = vmatprep.subr.mxu0 %v428
  %610 = vmatpush1.msra.mxu0 %v427
  %611 = vmatprep.subr.mxu0 %v434
  %612 = vmatpush1.msra.mxu0 %v433
  %613 = vmatprep.subr.mxu0 %v440
  %614 = vmatpush1.msra.mxu0 %v439
  %615 = vmatprep.subr.mxu0 %v446
  %616 = vmatpush1.msra.mxu0 %v445
  %617 = vmatprep.subr.mxu0 0.0
  %618 = vmatpush1.msra.mxu0 0.0
  %619 = vmatprep.subr.mxu0 0.0
  %620 = vmatpush1.msra.mxu0 0.0
  %621 = vmatprep.subr.mxu0 0.0
  %622 = vmatpush1.msra.mxu0 0.0
  %623 = vmatprep.subr.mxu0 0.0
  %624 = vmatpush1.msra.mxu0 0.0
  %625 = vmatprep.subr.mxu0 0.0
  %626 = vmatpush1.msra.mxu0 0.0
  %627 = vmatprep.subr.mxu0 0.0
  %628 = vmatpush1.msra.mxu0 0.0
  %629 = vmatprep.subr.mxu0 0.0
  %630 = vmatpush1.msra.mxu0 0.0
  %631 = vmatprep.subr.mxu0 0.0
  %632 = vmatpush1.msra.mxu0 0.0
  %633 = vmatprep.subr.mxu0 0.0
  %634 = vmatpush1.msra.mxu0 0.0
  %635 = vmatprep.subr.mxu0 0.0
  %636 = vmatpush1.msra.mxu0 0.0
  %637 = vmatprep.subr.mxu0 0.0
  %638 = vmatpush1.msra.mxu0 0.0
  %639 = vmatprep.subr.mxu0 0.0
  %640 = vmatpush1.msra.mxu0 0.0
  %641 = vmatprep.subr.mxu0 0.0
  %642 = vmatpush1.msra.mxu0 0.0
  %643 = vmatprep.subr.mxu0 0.0
  %644 = vmatpush1.msra.mxu0 0.0
  %645 = vmatprep.subr.mxu0 0.0
  %646 = vmatpush1.msra.mxu0 0.0
  %647 = vmatprep.subr.mxu0 0.0
  %648 = vmatpush1.msra.mxu0 0.0
  %649 = vmatprep.subr.mxu0 0.0
  %650 = vmatpush1.msra.mxu0 0.0
  %651 = vmatprep.subr.mxu0 0.0
  %652 = vmatpush1.msra.mxu0 0.0
  %653 = vmatprep.subr.mxu0 0.0
  %654 = vmatpush1.msra.mxu0 0.0
  %655 = vmatprep.subr.mxu0 0.0
  %656 = vmatpush1.msra.mxu0 0.0
  %657 = vmatprep.subr.mxu0 0.0
  %658 = vmatpush1.msra.mxu0 0.0
  %659 = vmatprep.subr.mxu0 0.0
  %660 = vmatpush1.msra.mxu0 0.0
  %661 = vmatprep.subr.mxu0 0.0
  %662 = vmatpush1.msra.mxu0 0.0
  %663 = vmatprep.mubr.f32.mxu0 0.0
  %664 = vmatmul.mubr.f32.gmra.mrb[0].mxu0 %v455
  %v665 = vpop.f32.mrb[0].mxu0
  %v666 = vadd.f32 %v451, %v665
  %v667 = vpop.f32.mrb[0].mxu0
  %v668 = vadd.f32 %v451, %v667
  %669 = vdwg.mxu0
  %s670 = sld [smem:[#allocation4]]
  %vm671 = vcmp.gt.f32.partialorder %v524, 0.0
  %vm672 = vcmp.gt.f32.partialorder %v526, 0.0
  %vm673 = vcmp.gt.f32.partialorder %v595, 0.0
  %vm674 = vcmp.gt.f32.partialorder %v597, 0.0
  %vm675 = vcmp.gt.f32.partialorder %v666, 0.0
  %vm676 = vcmp.gt.f32.partialorder %v668, 0.0
  %v677 = vstv %s670
  %v678 = vmul.f32 %v677, %v524
  %v679 = vmul.f32 %v677, %v526
  %v680 = vmul.f32 %v677, %v595
  %v681 = vmul.f32 %v677, %v597
  %v682 = vmul.f32 %v677, %v666
  %v683 = vmul.f32 %v677, %v668
  %v684 = vsel %vm671, %v524, %v678
  %v685 = vsel %vm672, %v526, %v679
  %v686 = vsel %vm673, %v595, %v680
  %v687 = vsel %vm674, %v597, %v681
  %v688 = vsel %vm675, %v666, %v682
  %v689 = vsel %vm676, %v668, %v683
  %v691 = vlaneseq
  %v692 = vshrl.u32 %v691, 7
  %v693 = vsub.s32 0, %v692
  %v694 = vrot.slane %v37, %v693
  %v695 = vlaneseq
  %v696 = vshrl.u32 %v695, 7
  %v697 = vsub.s32 1, %v696
  %v698 = vrot.slane %v37, %v697
  %v699 = vlaneseq
  %v700 = vshrl.u32 %v699, 7
  %v701 = vsub.s32 2, %v700
  %v702 = vrot.slane %v37, %v701
  %v703 = vlaneseq
  %v704 = vshrl.u32 %v703, 7
  %v705 = vsub.s32 3, %v704
  %v706 = vrot.slane %v37, %v705
  %v707 = vlaneseq
  %v708 = vshrl.u32 %v707, 7
  %v709 = vsub.s32 4, %v708
  %v710 = vrot.slane %v37, %v709
  %v711 = vlaneseq
  %v712 = vshrl.u32 %v711, 7
  %v713 = vsub.s32 5, %v712
  %v714 = vrot.slane %v37, %v713
  %v721 = vmul.f32 %v684, %v694
  %v722 = vmul.f32 %v685, %v698
  %v723 = vmul.f32 %v686, %v702
  %v724 = vmul.f32 %v687, %v706
  %v725 = vmul.f32 %v688, %v710
  %v726 = vmul.f32 %v689, %v714
  %727 = vst [vmem:[#allocation3] sm:$0xff] 0.0
  %728 = vst [vmem:[#allocation3 + $0x8] sm:$0xff] 0.0
  %729 = vst [vmem:[#allocation3 + $0x10] sm:$0xff] 0.0
  %730 = vst [vmem:[#allocation3 + $0x18] sm:$0xff] 0.0
  %731 = vst [vmem:[#allocation3 + $0x20] sm:$0xff] 0.0
  %732 = vst [vmem:[#allocation3 + $0x28] sm:$0xff] 0.0
  %733 = vst [vmem:[#allocation3 + $0x30] sm:$0xff] 0.0
  %734 = vst.msk [vmem:[#allocation3 + $0x38] sm:$0xff] %vm79, 0.0
  %735 = vst [vmem:[#allocation3 + $0x8] sm:$0xff] %v721
  %736 = vst [vmem:[#allocation3 + $0x10] sm:$0xff] %v722
  %737 = vst [vmem:[#allocation3 + $0x18] sm:$0xff] %v723
  %738 = vst [vmem:[#allocation3 + $0x20] sm:$0xff] %v724
  %739 = vst [vmem:[#allocation3 + $0x28] sm:$0xff] %v725
  %740 = vst.msk [vmem:[#allocation3 + $0x30] sm:$0xff] %vm79, %v726
  %v741 = vld [vmem:[#allocation3] sm:$0xff]
  %v742 = vld [vmem:[#allocation3 + $0x8] sm:$0xff]
  %v743 = vld [vmem:[#allocation3 + $0x10] sm:$0xff]
  %v744 = vld [vmem:[#allocation3 + $0x18] sm:$0xff]
  %v745 = vld [vmem:[#allocation3 + $0x20] sm:$0xff]
  %v746 = vld [vmem:[#allocation3 + $0x28] sm:$0xff]
  %753 = vrot.lane.b32.xlu0 %v741, 19
  %v754 = vpop.permute.xlu0 %753
  %755 = vrot.lane.b32.xlu0 %v742, 19
  %v756 = vpop.permute.xlu0 %755
  %757 = vrot.lane.b32.xlu0 %v743, 19
  %v758 = vpop.permute.xlu0 %757
  %759 = vrot.lane.b32.xlu0 %v744, 19
  %v760 = vpop.permute.xlu0 %759
  %761 = vrot.lane.b32.xlu0 %v745, 19
  %v762 = vpop.permute.xlu0 %761
  %763 = vrot.lane.b32.xlu0 %v746, 19
  %v764 = vpop.permute.xlu0 %763
  %v765 = vsel %vm62, %v754, %v756
  %v766 = vsel %vm62, %v756, %v758
  %v767 = vsel %vm62, %v758, %v760
  %v768 = vsel %vm62, %v760, %v762
  %v769 = vsel %vm62, %v762, %v764
  %776 = vst [vmem:[#allocation2] sm:$0xff] %v765
  %777 = vst [vmem:[#allocation2 + $0x8] sm:$0xff] %v766
  %778 = vst [vmem:[#allocation2 + $0x10] sm:$0xff] %v767
  %779 = vst [vmem:[#allocation2 + $0x18] sm:$0xff] %v768
  %780 = vst [vmem:[#allocation2 + $0x20] sm:$0xff] %v769
  %781 = vst.msk [vmem:[#allocation2 + $0x28] sm:$0xff] %vm79, %v764
  %v782 = vld [vmem:[#allocation3] sm:$0xff]
  %v783 = vld [vmem:[#allocation3 + $0x8] sm:$0xff]
  %v784 = vld [vmem:[#allocation3 + $0x10] sm:$0xff]
  %v785 = vld [vmem:[#allocation3 + $0x18] sm:$0xff]
  %v786 = vld [vmem:[#allocation3 + $0x20] sm:$0xff]
  %v787 = vld [vmem:[#allocation3 + $0x28] sm:$0xff]
  %794 = vrot.lane.b32.xlu0 %v782, 18
  %v795 = vpop.permute.xlu0 %794
  %796 = vrot.lane.b32.xlu0 %v783, 18
  %v797 = vpop.permute.xlu0 %796
  %798 = vrot.lane.b32.xlu0 %v784, 18
  %v799 = vpop.permute.xlu0 %798
  %800 = vrot.lane.b32.xlu0 %v785, 18
  %v801 = vpop.permute.xlu0 %800
  %802 = vrot.lane.b32.xlu0 %v786, 18
  %v803 = vpop.permute.xlu0 %802
  %804 = vrot.lane.b32.xlu0 %v787, 18
  %v805 = vpop.permute.xlu0 %804
  %v806 = vsel %vm105, %v795, %v797
  %v807 = vsel %vm105, %v797, %v799
  %v808 = vsel %vm105, %v799, %v801
  %v809 = vsel %vm105, %v801, %v803
  %v810 = vsel %vm105, %v803, %v805
  %817 = vst [vmem:[#allocation2 + $0x30] sm:$0xff] %v806
  %818 = vst [vmem:[#allocation2 + $0x38] sm:$0xff] %v807
  %819 = vst [vmem:[#allocation2 + $0x40] sm:$0xff] %v808
  %820 = vst [vmem:[#allocation2 + $0x48] sm:$0xff] %v809
  %821 = vst [vmem:[#allocation2 + $0x50] sm:$0xff] %v810
  %822 = vst.msk [vmem:[#allocation2 + $0x58] sm:$0xff] %vm79, %v805
  %v823 = vld [vmem:[#allocation3] sm:$0xff]
  %v824 = vld [vmem:[#allocation3 + $0x8] sm:$0xff]
  %v825 = vld [vmem:[#allocation3 + $0x10] sm:$0xff]
  %v826 = vld [vmem:[#allocation3 + $0x18] sm:$0xff]
  %v827 = vld [vmem:[#allocation3 + $0x20] sm:$0xff]
  %v828 = vld [vmem:[#allocation3 + $0x28] sm:$0xff]
  %835 = vrot.lane.b32.xlu0 %v823, 17
  %v836 = vpop.permute.xlu0 %835
  %837 = vrot.lane.b32.xlu0 %v824, 17
  %v838 = vpop.permute.xlu0 %837
  %839 = vrot.lane.b32.xlu0 %v825, 17
  %v840 = vpop.permute.xlu0 %839
  %841 = vrot.lane.b32.xlu0 %v826, 17
  %v842 = vpop.permute.xlu0 %841
  %843 = vrot.lane.b32.xlu0 %v827, 17
  %v844 = vpop.permute.xlu0 %843
  %845 = vrot.lane.b32.xlu0 %v828, 17
  %v846 = vpop.permute.xlu0 %845
  %v847 = vsel %vm147, %v836, %v838
  %v848 = vsel %vm147, %v838, %v840
  %v849 = vsel %vm147, %v840, %v842
  %v850 = vsel %vm147, %v842, %v844
  %v851 = vsel %vm147, %v844, %v846
  %858 = vst [vmem:[#allocation2 + $0x60] sm:$0xff] %v847
  %859 = vst [vmem:[#allocation2 + $0x68] sm:$0xff] %v848
  %860 = vst [vmem:[#allocation2 + $0x70] sm:$0xff] %v849
  %861 = vst [vmem:[#allocation2 + $0x78] sm:$0xff] %v850
  %862 = vst [vmem:[#allocation2 + $0x80] sm:$0xff] %v851
  %863 = vst.msk [vmem:[#allocation2 + $0x88] sm:$0xff] %vm79, %v846
  %v864 = vld [vmem:[#allocation3] sm:$0xff]
  %v865 = vld [vmem:[#allocation3 + $0x8] sm:$0xff]
  %v866 = vld [vmem:[#allocation3 + $0x10] sm:$0xff]
  %v867 = vld [vmem:[#allocation3 + $0x18] sm:$0xff]
  %v868 = vld [vmem:[#allocation3 + $0x20] sm:$0xff]
  %v869 = vld [vmem:[#allocation3 + $0x28] sm:$0xff]
  %v870 = vld [vmem:[#allocation3 + $0x30] sm:$0xff]
  %878 = vrot.lane.b32.xlu0 %v864, 1
  %v879 = vpop.permute.xlu0 %878
  %880 = vrot.lane.b32.xlu0 %v865, 1
  %v881 = vpop.permute.xlu0 %880
  %882 = vrot.lane.b32.xlu0 %v866, 1
  %v883 = vpop.permute.xlu0 %882
  %884 = vrot.lane.b32.xlu0 %v867, 1
  %v885 = vpop.permute.xlu0 %884
  %886 = vrot.lane.b32.xlu0 %v868, 1
  %v887 = vpop.permute.xlu0 %886
  %888 = vrot.lane.b32.xlu0 %v869, 1
  %v889 = vpop.permute.xlu0 %888
  %890 = vrot.lane.b32.xlu0 %v870, 1
  %v891 = vpop.permute.xlu0 %890
  %v892 = vsel %vm193, %v879, %v881
  %v893 = vsel %vm193, %v881, %v883
  %v894 = vsel %vm193, %v883, %v885
  %v895 = vsel %vm193, %v885, %v887
  %v896 = vsel %vm193, %v887, %v889
  %v897 = vsel %vm193, %v889, %v891
  %904 = vst [vmem:[#allocation2 + $0x90] sm:$0xff] %v892
  %905 = vst [vmem:[#allocation2 + $0x98] sm:$0xff] %v893
  %906 = vst [vmem:[#allocation2 + $0xa0] sm:$0xff] %v894
  %907 = vst [vmem:[#allocation2 + $0xa8] sm:$0xff] %v895
  %908 = vst [vmem:[#allocation2 + $0xb0] sm:$0xff] %v896
  %909 = vst.msk [vmem:[#allocation2 + $0xb8] sm:$0xff] %vm79, %v897
  %v910 = vld [vmem:[#allocation3 + $0x8] sm:$0xff]
  %v911 = vld [vmem:[#allocation3 + $0x10] sm:$0xff]
  %v912 = vld [vmem:[#allocation3 + $0x18] sm:$0xff]
  %v913 = vld [vmem:[#allocation3 + $0x20] sm:$0xff]
  %v914 = vld [vmem:[#allocation3 + $0x28] sm:$0xff]
  %v915 = vld [vmem:[#allocation3 + $0x30] sm:$0xff]
  %916 = vst [vmem:[#allocation2 + $0xc0] sm:$0xff] %v910
  %917 = vst [vmem:[#allocation2 + $0xc8] sm:$0xff] %v911
  %918 = vst [vmem:[#allocation2 + $0xd0] sm:$0xff] %v912
  %919 = vst [vmem:[#allocation2 + $0xd8] sm:$0xff] %v913
  %920 = vst [vmem:[#allocation2 + $0xe0] sm:$0xff] %v914
  %921 = vst.msk [vmem:[#allocation2 + $0xe8] sm:$0xff] %vm79, %v915
  %v922 = vld [vmem:[#allocation3 + $0x8] sm:$0xff]
  %v923 = vld [vmem:[#allocation3 + $0x10] sm:$0xff]
  %v924 = vld [vmem:[#allocation3 + $0x18] sm:$0xff]
  %v925 = vld [vmem:[#allocation3 + $0x20] sm:$0xff]
  %v926 = vld [vmem:[#allocation3 + $0x28] sm:$0xff]
  %v927 = vld [vmem:[#allocation3 + $0x30] sm:$0xff]
  %934 = vrot.lane.b32.xlu0 %v922, 127
  %v935 = vpop.permute.xlu0 %934
  %936 = vrot.lane.b32.xlu0 %v923, 127
  %v937 = vpop.permute.xlu0 %936
  %938 = vrot.lane.b32.xlu0 %v924, 127
  %v939 = vpop.permute.xlu0 %938
  %940 = vrot.lane.b32.xlu0 %v925, 127
  %v941 = vpop.permute.xlu0 %940
  %942 = vrot.lane.b32.xlu0 %v926, 127
  %v943 = vpop.permute.xlu0 %942
  %944 = vrot.lane.b32.xlu0 %v927, 127
  %v945 = vpop.permute.xlu0 %944
  %v946 = vsel %vm248, %v935, %v937
  %v947 = vsel %vm248, %v937, %v939
  %v948 = vsel %vm248, %v939, %v941
  %v949 = vsel %vm248, %v941, %v943
  %v950 = vsel %vm248, %v943, %v945
  %957 = vst [vmem:[#allocation2 + $0xf0] sm:$0xff] %v946
  %958 = vst [vmem:[#allocation2 + $0xf8] sm:$0xff] %v947
  %959 = vst [vmem:[#allocation2 + $0x100] sm:$0xff] %v948
  %960 = vst [vmem:[#allocation2 + $0x108] sm:$0xff] %v949
  %961 = vst [vmem:[#allocation2 + $0x110] sm:$0xff] %v950
  %962 = vst.msk [vmem:[#allocation2 + $0x118] sm:$0xff] %vm79, %v945
  %v963 = vld [vmem:[#allocation3 + $0x8] sm:$0xff]
  %v964 = vld [vmem:[#allocation3 + $0x10] sm:$0xff]
  %v965 = vld [vmem:[#allocation3 + $0x18] sm:$0xff]
  %v966 = vld [vmem:[#allocation3 + $0x20] sm:$0xff]
  %v967 = vld [vmem:[#allocation3 + $0x28] sm:$0xff]
  %v968 = vld [vmem:[#allocation3 + $0x30] sm:$0xff]
  %975 = vrot.lane.b32.xlu0 %v963, 111
  %v976 = vpop.permute.xlu0 %975
  %977 = vrot.lane.b32.xlu0 %v964, 111
  %v978 = vpop.permute.xlu0 %977
  %979 = vrot.lane.b32.xlu0 %v965, 111
  %v980 = vpop.permute.xlu0 %979
  %981 = vrot.lane.b32.xlu0 %v966, 111
  %v982 = vpop.permute.xlu0 %981
  %983 = vrot.lane.b32.xlu0 %v967, 111
  %v984 = vpop.permute.xlu0 %983
  %985 = vrot.lane.b32.xlu0 %v968, 111
  %v986 = vpop.permute.xlu0 %985
  %v987 = vsel %vm290, %v976, %v978
  %v988 = vsel %vm290, %v978, %v980
  %v989 = vsel %vm290, %v980, %v982
  %v990 = vsel %vm290, %v982, %v984
  %v991 = vsel %vm290, %v984, %v986
  %998 = vst [vmem:[#allocation2 + $0x120] sm:$0xff] %v987
  %999 = vst [vmem:[#allocation2 + $0x128] sm:$0xff] %v988
  %1000 = vst [vmem:[#allocation2 + $0x130] sm:$0xff] %v989
  %1001 = vst [vmem:[#allocation2 + $0x138] sm:$0xff] %v990
  %1002 = vst [vmem:[#allocation2 + $0x140] sm:$0xff] %v991
  %1003 = vst.msk [vmem:[#allocation2 + $0x148] sm:$0xff] %vm79, %v986
  %v1004 = vld [vmem:[#allocation3 + $0x8] sm:$0xff]
  %v1005 = vld [vmem:[#allocation3 + $0x10] sm:$0xff]
  %v1006 = vld [vmem:[#allocation3 + $0x18] sm:$0xff]
  %v1007 = vld [vmem:[#allocation3 + $0x20] sm:$0xff]
  %v1008 = vld [vmem:[#allocation3 + $0x28] sm:$0xff]
  %v1009 = vld [vmem:[#allocation3 + $0x30] sm:$0xff]
  %1016 = vrot.lane.b32.xlu0 %v1004, 110
  %v1017 = vpop.permute.xlu0 %1016
  %1018 = vrot.lane.b32.xlu0 %v1005, 110
  %v1019 = vpop.permute.xlu0 %1018
  %1020 = vrot.lane.b32.xlu0 %v1006, 110
  %v1021 = vpop.permute.xlu0 %1020
  %1022 = vrot.lane.b32.xlu0 %v1007, 110
  %v1023 = vpop.permute.xlu0 %1022
  %1024 = vrot.lane.b32.xlu0 %v1008, 110
  %v1025 = vpop.permute.xlu0 %1024
  %1026 = vrot.lane.b32.xlu0 %v1009, 110
  %v1027 = vpop.permute.xlu0 %1026
  %v1028 = vsel %vm332, %v1017, %v1019
  %v1029 = vsel %vm332, %v1019, %v1021
  %v1030 = vsel %vm332, %v1021, %v1023
  %v1031 = vsel %vm332, %v1023, %v1025
  %v1032 = vsel %vm332, %v1025, %v1027
  %1039 = vst [vmem:[#allocation2 + $0x150] sm:$0xff] %v1028
  %1040 = vst [vmem:[#allocation2 + $0x158] sm:$0xff] %v1029
  %1041 = vst [vmem:[#allocation2 + $0x160] sm:$0xff] %v1030
  %1042 = vst [vmem:[#allocation2 + $0x168] sm:$0xff] %v1031
  %1043 = vst [vmem:[#allocation2 + $0x170] sm:$0xff] %v1032
  %1044 = vst.msk [vmem:[#allocation2 + $0x178] sm:$0xff] %vm79, %v1027
  %v1045 = vld [vmem:[#allocation3 + $0x8] sm:$0xff]
  %v1046 = vld [vmem:[#allocation3 + $0x10] sm:$0xff]
  %v1047 = vld [vmem:[#allocation3 + $0x18] sm:$0xff]
  %v1048 = vld [vmem:[#allocation3 + $0x20] sm:$0xff]
  %v1049 = vld [vmem:[#allocation3 + $0x28] sm:$0xff]
  %v1050 = vld [vmem:[#allocation3 + $0x30] sm:$0xff]
  %1057 = vrot.lane.b32.xlu0 %v1045, 109
  %v1058 = vpop.permute.xlu0 %1057
  %1059 = vrot.lane.b32.xlu0 %v1046, 109
  %v1060 = vpop.permute.xlu0 %1059
  %1061 = vrot.lane.b32.xlu0 %v1047, 109
  %v1062 = vpop.permute.xlu0 %1061
  %1063 = vrot.lane.b32.xlu0 %v1048, 109
  %v1064 = vpop.permute.xlu0 %1063
  %1065 = vrot.lane.b32.xlu0 %v1049, 109
  %v1066 = vpop.permute.xlu0 %1065
  %1067 = vrot.lane.b32.xlu0 %v1050, 109
  %v1068 = vpop.permute.xlu0 %1067
  %v1069 = vsel %vm374, %v1058, %v1060
  %v1070 = vsel %vm374, %v1060, %v1062
  %v1071 = vsel %vm374, %v1062, %v1064
  %v1072 = vsel %vm374, %v1064, %v1066
  %v1073 = vsel %vm374, %v1066, %v1068
  %1080 = vst [vmem:[#allocation2 + $0x180] sm:$0xff] %v1069
  %1081 = vst [vmem:[#allocation2 + $0x188] sm:$0xff] %v1070
  %1082 = vst [vmem:[#allocation2 + $0x190] sm:$0xff] %v1071
  %1083 = vst [vmem:[#allocation2 + $0x198] sm:$0xff] %v1072
  %1084 = vst [vmem:[#allocation2 + $0x1a0] sm:$0xff] %v1073
  %1085 = vst.msk [vmem:[#allocation2 + $0x1a8] sm:$0xff] %vm79, %v1068
  %v1086 = vld [vmem:[%s7] sm:$0xff]
  %v1087 = vld [vmem:[#allocation2] sm:$0xff]
  %v1088 = vld [vmem:[#allocation2 + $0x8] sm:$0xff]
  %v1089 = vld [vmem:[#allocation2 + $0x10] sm:$0xff]
  %v1090 = vld [vmem:[#allocation2 + $0x18] sm:$0xff]
  %v1091 = vld [vmem:[#allocation2 + $0x20] sm:$0xff]
  %v1092 = vld [vmem:[#allocation2 + $0x28] sm:$0xff]
  %v1093 = vld [vmem:[#allocation2 + $0x30] sm:$0xff]
  %v1094 = vld [vmem:[#allocation2 + $0x38] sm:$0xff]
  %v1095 = vld [vmem:[#allocation2 + $0x40] sm:$0xff]
  %v1096 = vld [vmem:[#allocation2 + $0x48] sm:$0xff]
  %v1097 = vld [vmem:[#allocation2 + $0x50] sm:$0xff]
  %v1098 = vld [vmem:[#allocation2 + $0x58] sm:$0xff]
  %v1099 = vld [vmem:[#allocation2 + $0x60] sm:$0xff]
  %v1100 = vld [vmem:[#allocation2 + $0x68] sm:$0xff]
  %v1101 = vld [vmem:[#allocation2 + $0x70] sm:$0xff]
  %v1102 = vld [vmem:[#allocation2 + $0x78] sm:$0xff]
  %v1103 = vld [vmem:[#allocation2 + $0x80] sm:$0xff]
  %v1104 = vld [vmem:[#allocation2 + $0x88] sm:$0xff]
  %v1105 = vld [vmem:[#allocation2 + $0x90] sm:$0xff]
  %v1106 = vld [vmem:[#allocation2 + $0x98] sm:$0xff]
  %v1107 = vld [vmem:[#allocation2 + $0xa0] sm:$0xff]
  %v1108 = vld [vmem:[#allocation2 + $0xa8] sm:$0xff]
  %v1109 = vld [vmem:[#allocation2 + $0xb0] sm:$0xff]
  %v1110 = vld [vmem:[#allocation2 + $0xb8] sm:$0xff]
  %v1111 = vld [vmem:[#allocation2 + $0xc0] sm:$0xff]
  %v1112 = vld [vmem:[#allocation2 + $0xc8] sm:$0xff]
  %v1113 = vld [vmem:[#allocation2 + $0xd0] sm:$0xff]
  %v1114 = vld [vmem:[#allocation2 + $0xd8] sm:$0xff]
  %v1115 = vld [vmem:[#allocation2 + $0xe0] sm:$0xff]
  %v1116 = vld [vmem:[#allocation2 + $0xe8] sm:$0xff]
  %v1117 = vld [vmem:[#allocation2 + $0xf0] sm:$0xff]
  %v1118 = vld [vmem:[#allocation2 + $0xf8] sm:$0xff]
  %v1119 = vld [vmem:[#allocation2 + $0x100] sm:$0xff]
  %v1120 = vld [vmem:[#allocation2 + $0x108] sm:$0xff]
  %v1121 = vld [vmem:[#allocation2 + $0x110] sm:$0xff]
  %v1122 = vld [vmem:[#allocation2 + $0x118] sm:$0xff]
  %v1123 = vld [vmem:[#allocation2 + $0x120] sm:$0xff]
  %v1124 = vld [vmem:[#allocation2 + $0x128] sm:$0xff]
  %v1125 = vld [vmem:[#allocation2 + $0x130] sm:$0xff]
  %v1126 = vld [vmem:[#allocation2 + $0x138] sm:$0xff]
  %v1127 = vld [vmem:[#allocation2 + $0x140] sm:$0xff]
  %v1128 = vld [vmem:[#allocation2 + $0x148] sm:$0xff]
  %v1129 = vld [vmem:[#allocation2 + $0x150] sm:$0xff]
  %v1130 = vld [vmem:[#allocation2 + $0x158] sm:$0xff]
  %v1131 = vld [vmem:[#allocation2 + $0x160] sm:$0xff]
  %v1132 = vld [vmem:[#allocation2 + $0x168] sm:$0xff]
  %v1133 = vld [vmem:[#allocation2 + $0x170] sm:$0xff]
  %v1134 = vld [vmem:[#allocation2 + $0x178] sm:$0xff]
  %v1135 = vld [vmem:[#allocation2 + $0x180] sm:$0xff]
  %v1136 = vld [vmem:[#allocation2 + $0x188] sm:$0xff]
  %v1137 = vld [vmem:[#allocation2 + $0x190] sm:$0xff]
  %v1138 = vld [vmem:[#allocation2 + $0x198] sm:$0xff]
  %v1139 = vld [vmem:[#allocation2 + $0x1a0] sm:$0xff]
  %v1140 = vld [vmem:[#allocation2 + $0x1a8] sm:$0xff]
  %v1141 = vld [vmem:[%s8] sm:$0xff]
  %1143 = vset.pattern.permute.xlu0 0
  %1144 = vperm.xlu0 %1143, %v1141
  %v1145 = vpop.permute.xlu0 %1144
  %v1148 = vsel %vm453, %v1086, 0
  %1150 = vmatprep.subr.mxu0 %v1088
  %1151 = vmatpush1.msra.mxu0 %v1087
  %1152 = vmatprep.subr.mxu0 %v1094
  %1153 = vmatpush1.msra.mxu0 %v1093
  %1154 = vmatprep.subr.mxu0 %v1100
  %1155 = vmatpush1.msra.mxu0 %v1099
  %1156 = vmatprep.subr.mxu0 %v1106
  %1157 = vmatpush1.msra.mxu0 %v1105
  %1158 = vmatprep.subr.mxu0 %v1112
  %1159 = vmatpush1.msra.mxu0 %v1111
  %1160 = vmatprep.subr.mxu0 %v1118
  %1161 = vmatpush1.msra.mxu0 %v1117
  %1162 = vmatprep.subr.mxu0 %v1124
  %1163 = vmatpush1.msra.mxu0 %v1123
  %1164 = vmatprep.subr.mxu0 %v1130
  %1165 = vmatpush1.msra.mxu0 %v1129
  %1166 = vmatprep.subr.mxu0 %v1136
  %1167 = vmatpush1.msra.mxu0 %v1135
  %1168 = vmatprep.subr.mxu0 0.0
  %1169 = vmatpush1.msra.mxu0 0.0
  %1170 = vmatprep.subr.mxu0 0.0
  %1171 = vmatpush1.msra.mxu0 0.0
  %1172 = vmatprep.subr.mxu0 0.0
  %1173 = vmatpush1.msra.mxu0 0.0
  %1174 = vmatprep.subr.mxu0 0.0
  %1175 = vmatpush1.msra.mxu0 0.0
  %1176 = vmatprep.subr.mxu0 0.0
  %1177 = vmatpush1.msra.mxu0 0.0
  %1178 = vmatprep.subr.mxu0 0.0
  %1179 = vmatpush1.msra.mxu0 0.0
  %1180 = vmatprep.subr.mxu0 0.0
  %1181 = vmatpush1.msra.mxu0 0.0
  %1182 = vmatprep.subr.mxu0 0.0
  %1183 = vmatpush1.msra.mxu0 0.0
  %1184 = vmatprep.subr.mxu0 0.0
  %1185 = vmatpush1.msra.mxu0 0.0
  %1186 = vmatprep.subr.mxu0 0.0
  %1187 = vmatpush1.msra.mxu0 0.0
  %1188 = vmatprep.subr.mxu0 0.0
  %1189 = vmatpush1.msra.mxu0 0.0
  %1190 = vmatprep.subr.mxu0 0.0
  %1191 = vmatpush1.msra.mxu0 0.0
  %1192 = vmatprep.subr.mxu0 0.0
  %1193 = vmatpush1.msra.mxu0 0.0
  %1194 = vmatprep.subr.mxu0 0.0
  %1195 = vmatpush1.msra.mxu0 0.0
  %1196 = vmatprep.subr.mxu0 0.0
  %1197 = vmatpush1.msra.mxu0 0.0
  %1198 = vmatprep.subr.mxu0 0.0
  %1199 = vmatpush1.msra.mxu0 0.0
  %1200 = vmatprep.subr.mxu0 0.0
  %1201 = vmatpush1.msra.mxu0 0.0
  %1202 = vmatprep.subr.mxu0 0.0
  %1203 = vmatpush1.msra.mxu0 0.0
  %1204 = vmatprep.subr.mxu0 0.0
  %1205 = vmatpush1.msra.mxu0 0.0
  %1206 = vmatprep.subr.mxu0 0.0
  %1207 = vmatpush1.msra.mxu0 0.0
  %1208 = vmatprep.subr.mxu0 0.0
  %1209 = vmatpush1.msra.mxu0 0.0
  %1210 = vmatprep.subr.mxu0 0.0
  %1211 = vmatpush1.msra.mxu0 0.0
  %1212 = vmatprep.subr.mxu0 0.0
  %1213 = vmatpush1.msra.mxu0 0.0
  %1214 = vmatprep.mubr.f32.mxu0 0.0
  %1215 = vmatmul.mubr.f32.gmra.mrb[0].mxu0 %v1148
  %v1216 = vpop.f32.mrb[0].mxu0
  %v1217 = vadd.f32 %v1145, %v1216
  %v1218 = vpop.f32.mrb[0].mxu0
  %v1219 = vadd.f32 %v1145, %v1218
  %1220 = vdwg.mxu0
  %1221 = vmatprep.subr.mxu0 %v1090
  %1222 = vmatpush1.msra.mxu0 %v1089
  %1223 = vmatprep.subr.mxu0 %v1096
  %1224 = vmatpush1.msra.mxu0 %v1095
  %1225 = vmatprep.subr.mxu0 %v1102
  %1226 = vmatpush1.msra.mxu0 %v1101
  %1227 = vmatprep.subr.mxu0 %v1108
  %1228 = vmatpush1.msra.mxu0 %v1107
  %1229 = vmatprep.subr.mxu0 %v1114
  %1230 = vmatpush1.msra.mxu0 %v1113
  %1231 = vmatprep.subr.mxu0 %v1120
  %1232 = vmatpush1.msra.mxu0 %v1119
  %1233 = vmatprep.subr.mxu0 %v1126
  %1234 = vmatpush1.msra.mxu0 %v1125
  %1235 = vmatprep.subr.mxu0 %v1132
  %1236 = vmatpush1.msra.mxu0 %v1131
  %1237 = vmatprep.subr.mxu0 %v1138
  %1238 = vmatpush1.msra.mxu0 %v1137
  %1239 = vmatprep.subr.mxu0 0.0
  %1240 = vmatpush1.msra.mxu0 0.0
  %1241 = vmatprep.subr.mxu0 0.0
  %1242 = vmatpush1.msra.mxu0 0.0
  %1243 = vmatprep.subr.mxu0 0.0
  %1244 = vmatpush1.msra.mxu0 0.0
  %1245 = vmatprep.subr.mxu0 0.0
  %1246 = vmatpush1.msra.mxu0 0.0
  %1247 = vmatprep.subr.mxu0 0.0
  %1248 = vmatpush1.msra.mxu0 0.0
  %1249 = vmatprep.subr.mxu0 0.0
  %1250 = vmatpush1.msra.mxu0 0.0
  %1251 = vmatprep.subr.mxu0 0.0
  %1252 = vmatpush1.msra.mxu0 0.0
  %1253 = vmatprep.subr.mxu0 0.0
  %1254 = vmatpush1.msra.mxu0 0.0
  %1255 = vmatprep.subr.mxu0 0.0
  %1256 = vmatpush1.msra.mxu0 0.0
  %1257 = vmatprep.subr.mxu0 0.0
  %1258 = vmatpush1.msra.mxu0 0.0
  %1259 = vmatprep.subr.mxu0 0.0
  %1260 = vmatpush1.msra.mxu0 0.0
  %1261 = vmatprep.subr.mxu0 0.0
  %1262 = vmatpush1.msra.mxu0 0.0
  %1263 = vmatprep.subr.mxu0 0.0
  %1264 = vmatpush1.msra.mxu0 0.0
  %1265 = vmatprep.subr.mxu0 0.0
  %1266 = vmatpush1.msra.mxu0 0.0
  %1267 = vmatprep.subr.mxu0 0.0
  %1268 = vmatpush1.msra.mxu0 0.0
  %1269 = vmatprep.subr.mxu0 0.0
  %1270 = vmatpush1.msra.mxu0 0.0
  %1271 = vmatprep.subr.mxu0 0.0
  %1272 = vmatpush1.msra.mxu0 0.0
  %1273 = vmatprep.subr.mxu0 0.0
  %1274 = vmatpush1.msra.mxu0 0.0
  %1275 = vmatprep.subr.mxu0 0.0
  %1276 = vmatpush1.msra.mxu0 0.0
  %1277 = vmatprep.subr.mxu0 0.0
  %1278 = vmatpush1.msra.mxu0 0.0
  %1279 = vmatprep.subr.mxu0 0.0
  %1280 = vmatpush1.msra.mxu0 0.0
  %1281 = vmatprep.subr.mxu0 0.0
  %1282 = vmatpush1.msra.mxu0 0.0
  %1283 = vmatprep.subr.mxu0 0.0
  %1284 = vmatpush1.msra.mxu0 0.0
  %1285 = vmatprep.mubr.f32.mxu0 0.0
  %1286 = vmatmul.mubr.f32.gmra.mrb[0].mxu0 %v1148
  %v1287 = vpop.f32.mrb[0].mxu0
  %v1288 = vadd.f32 %v1145, %v1287
  %v1289 = vpop.f32.mrb[0].mxu0
  %v1290 = vadd.f32 %v1145, %v1289
  %1291 = vdwg.mxu0
  %1292 = vmatprep.subr.mxu0 %v1092
  %1293 = vmatpush1.msra.mxu0 %v1091
  %1294 = vmatprep.subr.mxu0 %v1098
  %1295 = vmatpush1.msra.mxu0 %v1097
  %1296 = vmatprep.subr.mxu0 %v1104
  %1297 = vmatpush1.msra.mxu0 %v1103
  %1298 = vmatprep.subr.mxu0 %v1110
  %1299 = vmatpush1.msra.mxu0 %v1109
  %1300 = vmatprep.subr.mxu0 %v1116
  %1301 = vmatpush1.msra.mxu0 %v1115
  %1302 = vmatprep.subr.mxu0 %v1122
  %1303 = vmatpush1.msra.mxu0 %v1121
  %1304 = vmatprep.subr.mxu0 %v1128
  %1305 = vmatpush1.msra.mxu0 %v1127
  %1306 = vmatprep.subr.mxu0 %v1134
  %1307 = vmatpush1.msra.mxu0 %v1133
  %1308 = vmatprep.subr.mxu0 %v1140
  %1309 = vmatpush1.msra.mxu0 %v1139
  %1310 = vmatprep.subr.mxu0 0.0
  %1311 = vmatpush1.msra.mxu0 0.0
  %1312 = vmatprep.subr.mxu0 0.0
  %1313 = vmatpush1.msra.mxu0 0.0
  %1314 = vmatprep.subr.mxu0 0.0
  %1315 = vmatpush1.msra.mxu0 0.0
  %1316 = vmatprep.subr.mxu0 0.0
  %1317 = vmatpush1.msra.mxu0 0.0
  %1318 = vmatprep.subr.mxu0 0.0
  %1319 = vmatpush1.msra.mxu0 0.0
  %1320 = vmatprep.subr.mxu0 0.0
  %1321 = vmatpush1.msra.mxu0 0.0
  %1322 = vmatprep.subr.mxu0 0.0
  %1323 = vmatpush1.msra.mxu0 0.0
  %1324 = vmatprep.subr.mxu0 0.0
  %1325 = vmatpush1.msra.mxu0 0.0
  %1326 = vmatprep.subr.mxu0 0.0
  %1327 = vmatpush1.msra.mxu0 0.0
  %1328 = vmatprep.subr.mxu0 0.0
  %1329 = vmatpush1.msra.mxu0 0.0
  %1330 = vmatprep.subr.mxu0 0.0
  %1331 = vmatpush1.msra.mxu0 0.0
  %1332 = vmatprep.subr.mxu0 0.0
  %1333 = vmatpush1.msra.mxu0 0.0
  %1334 = vmatprep.subr.mxu0 0.0
  %1335 = vmatpush1.msra.mxu0 0.0
  %1336 = vmatprep.subr.mxu0 0.0
  %1337 = vmatpush1.msra.mxu0 0.0
  %1338 = vmatprep.subr.mxu0 0.0
  %1339 = vmatpush1.msra.mxu0 0.0
  %1340 = vmatprep.subr.mxu0 0.0
  %1341 = vmatpush1.msra.mxu0 0.0
  %1342 = vmatprep.subr.mxu0 0.0
  %1343 = vmatpush1.msra.mxu0 0.0
  %1344 = vmatprep.subr.mxu0 0.0
  %1345 = vmatpush1.msra.mxu0 0.0
  %1346 = vmatprep.subr.mxu0 0.0
  %1347 = vmatpush1.msra.mxu0 0.0
  %1348 = vmatprep.subr.mxu0 0.0
  %1349 = vmatpush1.msra.mxu0 0.0
  %1350 = vmatprep.subr.mxu0 0.0
  %1351 = vmatpush1.msra.mxu0 0.0
  %1352 = vmatprep.subr.mxu0 0.0
  %1353 = vmatpush1.msra.mxu0 0.0
  %1354 = vmatprep.subr.mxu0 0.0
  %1355 = vmatpush1.msra.mxu0 0.0
  %1356 = vmatprep.mubr.f32.mxu0 0.0
  %1357 = vmatmul.mubr.f32.gmra.mrb[0].mxu0 %v1148
  %v1358 = vpop.f32.mrb[0].mxu0
  %v1359 = vadd.f32 %v1145, %v1358
  %v1360 = vpop.f32.mrb[0].mxu0
  %v1361 = vadd.f32 %v1145, %v1360
  %1362 = vdwg.mxu0
  %s1363 = sld [smem:[#allocation5]]
  %vm1364 = vcmp.gt.f32.partialorder %v1217, 0.0
  %vm1365 = vcmp.gt.f32.partialorder %v1219, 0.0
  %vm1366 = vcmp.gt.f32.partialorder %v1288, 0.0
  %vm1367 = vcmp.gt.f32.partialorder %v1290, 0.0
  %vm1368 = vcmp.gt.f32.partialorder %v1359, 0.0
  %vm1369 = vcmp.gt.f32.partialorder %v1361, 0.0
  %v1370 = vstv %s1363
  %v1371 = vmul.f32 %v1370, %v1217
  %v1372 = vmul.f32 %v1370, %v1219
  %v1373 = vmul.f32 %v1370, %v1288
  %v1374 = vmul.f32 %v1370, %v1290
  %v1375 = vmul.f32 %v1370, %v1359
  %v1376 = vmul.f32 %v1370, %v1361
  %v1377 = vsel %vm1364, %v1217, %v1371
  %v1378 = vsel %vm1365, %v1219, %v1372
  %v1379 = vsel %vm1366, %v1288, %v1373
  %v1380 = vsel %vm1367, %v1290, %v1374
  %v1381 = vsel %vm1368, %v1359, %v1375
  %v1382 = vsel %vm1369, %v1361, %v1376
  %v1383 = vld [vmem:[%s2] sm:$0xff]
  %v1384 = vld [vmem:[%s0 + $0x8] sm:$0xff]
  %v1385 = vld [vmem:[%s0 + $0x10] sm:$0xff]
  %v1386 = vld [vmem:[%s0 + $0x18] sm:$0xff]
  %v1387 = vld [vmem:[%s0 + $0x20] sm:$0xff]
  %v1388 = vld [vmem:[%s0 + $0x28] sm:$0xff]
  %v1389 = vld [vmem:[%s0 + $0x30] sm:$0xff]
  %v1390 = vld [vmem:[%s3] sm:$0xff]
  %1392 = vset.pattern.permute.xlu0 0
  %1393 = vperm.xlu0 %1392, %v1390
  %v1394 = vpop.permute.xlu0 %1393
  %v1397 = vsel %vm79, %v1383, 0
  %1399 = vmatprep.subr.mxu0 %v1385
  %1400 = vmatpush1.msra.mxu0 %v1384
  %1401 = vmatprep.subr.mxu0 0.0
  %1402 = vmatpush1.msra.mxu0 0.0
  %1403 = vmatprep.subr.mxu0 0.0
  %1404 = vmatpush1.msra.mxu0 0.0
  %1405 = vmatprep.subr.mxu0 0.0
  %1406 = vmatpush1.msra.mxu0 0.0
  %1407 = vmatprep.subr.mxu0 0.0
  %1408 = vmatpush1.msra.mxu0 0.0
  %1409 = vmatprep.subr.mxu0 0.0
  %1410 = vmatpush1.msra.mxu0 0.0
  %1411 = vmatprep.subr.mxu0 0.0
  %1412 = vmatpush1.msra.mxu0 0.0
  %1413 = vmatprep.subr.mxu0 0.0
  %1414 = vmatpush1.msra.mxu0 0.0
  %1415 = vmatprep.subr.mxu0 0.0
  %1416 = vmatpush1.msra.mxu0 0.0
  %1417 = vmatprep.subr.mxu0 0.0
  %1418 = vmatpush1.msra.mxu0 0.0
  %1419 = vmatprep.subr.mxu0 0.0
  %1420 = vmatpush1.msra.mxu0 0.0
  %1421 = vmatprep.subr.mxu0 0.0
  %1422 = vmatpush1.msra.mxu0 0.0
  %1423 = vmatprep.subr.mxu0 0.0
  %1424 = vmatpush1.msra.mxu0 0.0
  %1425 = vmatprep.subr.mxu0 0.0
  %1426 = vmatpush1.msra.mxu0 0.0
  %1427 = vmatprep.subr.mxu0 0.0
  %1428 = vmatpush1.msra.mxu0 0.0
  %1429 = vmatprep.subr.mxu0 0.0
  %1430 = vmatpush1.msra.mxu0 0.0
  %1431 = vmatprep.subr.mxu0 0.0
  %1432 = vmatpush1.msra.mxu0 0.0
  %1433 = vmatprep.subr.mxu0 0.0
  %1434 = vmatpush1.msra.mxu0 0.0
  %1435 = vmatprep.subr.mxu0 0.0
  %1436 = vmatpush1.msra.mxu0 0.0
  %1437 = vmatprep.subr.mxu0 0.0
  %1438 = vmatpush1.msra.mxu0 0.0
  %1439 = vmatprep.subr.mxu0 0.0
  %1440 = vmatpush1.msra.mxu0 0.0
  %1441 = vmatprep.subr.mxu0 0.0
  %1442 = vmatpush1.msra.mxu0 0.0
  %1443 = vmatprep.subr.mxu0 0.0
  %1444 = vmatpush1.msra.mxu0 0.0
  %1445 = vmatprep.subr.mxu0 0.0
  %1446 = vmatpush1.msra.mxu0 0.0
  %1447 = vmatprep.subr.mxu0 0.0
  %1448 = vmatpush1.msra.mxu0 0.0
  %1449 = vmatprep.subr.mxu0 0.0
  %1450 = vmatpush1.msra.mxu0 0.0
  %1451 = vmatprep.subr.mxu0 0.0
  %1452 = vmatpush1.msra.mxu0 0.0
  %1453 = vmatprep.subr.mxu0 0.0
  %1454 = vmatpush1.msra.mxu0 0.0
  %1455 = vmatprep.subr.mxu0 0.0
  %1456 = vmatpush1.msra.mxu0 0.0
  %1457 = vmatprep.subr.mxu0 0.0
  %1458 = vmatpush1.msra.mxu0 0.0
  %1459 = vmatprep.subr.mxu0 0.0
  %1460 = vmatpush1.msra.mxu0 0.0
  %1461 = vmatprep.subr.mxu0 0.0
  %1462 = vmatpush1.msra.mxu0 0.0
  %1463 = vmatprep.mubr.f32.mxu0 0.0
  %1464 = vmatmul.mubr.f32.gmra.mrb[0].mxu0 %v1397
  %v1465 = vpop.f32.mrb[0].mxu0
  %v1466 = vadd.f32 %v1394, %v1465
  %v1467 = vpop.f32.mrb[0].mxu0
  %v1468 = vadd.f32 %v1394, %v1467
  %1469 = vdwg.mxu0
  %1470 = vmatprep.subr.mxu0 %v1387
  %1471 = vmatpush1.msra.mxu0 %v1386
  %1472 = vmatprep.subr.mxu0 0.0
  %1473 = vmatpush1.msra.mxu0 0.0
  %1474 = vmatprep.subr.mxu0 0.0
  %1475 = vmatpush1.msra.mxu0 0.0
  %1476 = vmatprep.subr.mxu0 0.0
  %1477 = vmatpush1.msra.mxu0 0.0
  %1478 = vmatprep.subr.mxu0 0.0
  %1479 = vmatpush1.msra.mxu0 0.0
  %1480 = vmatprep.subr.mxu0 0.0
  %1481 = vmatpush1.msra.mxu0 0.0
  %1482 = vmatprep.subr.mxu0 0.0
  %1483 = vmatpush1.msra.mxu0 0.0
  %1484 = vmatprep.subr.mxu0 0.0
  %1485 = vmatpush1.msra.mxu0 0.0
  %1486 = vmatprep.subr.mxu0 0.0
  %1487 = vmatpush1.msra.mxu0 0.0
  %1488 = vmatprep.subr.mxu0 0.0
  %1489 = vmatpush1.msra.mxu0 0.0
  %1490 = vmatprep.subr.mxu0 0.0
  %1491 = vmatpush1.msra.mxu0 0.0
  %1492 = vmatprep.subr.mxu0 0.0
  %1493 = vmatpush1.msra.mxu0 0.0
  %1494 = vmatprep.subr.mxu0 0.0
  %1495 = vmatpush1.msra.mxu0 0.0
  %1496 = vmatprep.subr.mxu0 0.0
  %1497 = vmatpush1.msra.mxu0 0.0
  %1498 = vmatprep.subr.mxu0 0.0
  %1499 = vmatpush1.msra.mxu0 0.0
  %1500 = vmatprep.subr.mxu0 0.0
  %1501 = vmatpush1.msra.mxu0 0.0
  %1502 = vmatprep.subr.mxu0 0.0
  %1503 = vmatpush1.msra.mxu0 0.0
  %1504 = vmatprep.subr.mxu0 0.0
  %1505 = vmatpush1.msra.mxu0 0.0
  %1506 = vmatprep.subr.mxu0 0.0
  %1507 = vmatpush1.msra.mxu0 0.0
  %1508 = vmatprep.subr.mxu0 0.0
  %1509 = vmatpush1.msra.mxu0 0.0
  %1510 = vmatprep.subr.mxu0 0.0
  %1511 = vmatpush1.msra.mxu0 0.0
  %1512 = vmatprep.subr.mxu0 0.0
  %1513 = vmatpush1.msra.mxu0 0.0
  %1514 = vmatprep.subr.mxu0 0.0
  %1515 = vmatpush1.msra.mxu0 0.0
  %1516 = vmatprep.subr.mxu0 0.0
  %1517 = vmatpush1.msra.mxu0 0.0
  %1518 = vmatprep.subr.mxu0 0.0
  %1519 = vmatpush1.msra.mxu0 0.0
  %1520 = vmatprep.subr.mxu0 0.0
  %1521 = vmatpush1.msra.mxu0 0.0
  %1522 = vmatprep.subr.mxu0 0.0
  %1523 = vmatpush1.msra.mxu0 0.0
  %1524 = vmatprep.subr.mxu0 0.0
  %1525 = vmatpush1.msra.mxu0 0.0
  %1526 = vmatprep.subr.mxu0 0.0
  %1527 = vmatpush1.msra.mxu0 0.0
  %1528 = vmatprep.subr.mxu0 0.0
  %1529 = vmatpush1.msra.mxu0 0.0
  %1530 = vmatprep.subr.mxu0 0.0
  %1531 = vmatpush1.msra.mxu0 0.0
  %1532 = vmatprep.subr.mxu0 0.0
  %1533 = vmatpush1.msra.mxu0 0.0
  %1534 = vmatprep.mubr.f32.mxu0 0.0
  %1535 = vmatmul.mubr.f32.gmra.mrb[0].mxu0 %v1397
  %v1536 = vpop.f32.mrb[0].mxu0
  %v1537 = vadd.f32 %v1394, %v1536
  %v1538 = vpop.f32.mrb[0].mxu0
  %v1539 = vadd.f32 %v1394, %v1538
  %1540 = vdwg.mxu0
  %1541 = vmatprep.subr.mxu0 %v1389
  %1542 = vmatpush1.msra.mxu0 %v1388
  %1543 = vmatprep.subr.mxu0 0.0
  %1544 = vmatpush1.msra.mxu0 0.0
  %1545 = vmatprep.subr.mxu0 0.0
  %1546 = vmatpush1.msra.mxu0 0.0
  %1547 = vmatprep.subr.mxu0 0.0
  %1548 = vmatpush1.msra.mxu0 0.0
  %1549 = vmatprep.subr.mxu0 0.0
  %1550 = vmatpush1.msra.mxu0 0.0
  %1551 = vmatprep.subr.mxu0 0.0
  %1552 = vmatpush1.msra.mxu0 0.0
  %1553 = vmatprep.subr.mxu0 0.0
  %1554 = vmatpush1.msra.mxu0 0.0
  %1555 = vmatprep.subr.mxu0 0.0
  %1556 = vmatpush1.msra.mxu0 0.0
  %1557 = vmatprep.subr.mxu0 0.0
  %1558 = vmatpush1.msra.mxu0 0.0
  %1559 = vmatprep.subr.mxu0 0.0
  %1560 = vmatpush1.msra.mxu0 0.0
  %1561 = vmatprep.subr.mxu0 0.0
  %1562 = vmatpush1.msra.mxu0 0.0
  %1563 = vmatprep.subr.mxu0 0.0
  %1564 = vmatpush1.msra.mxu0 0.0
  %1565 = vmatprep.subr.mxu0 0.0
  %1566 = vmatpush1.msra.mxu0 0.0
  %1567 = vmatprep.subr.mxu0 0.0
  %1568 = vmatpush1.msra.mxu0 0.0
  %1569 = vmatprep.subr.mxu0 0.0
  %1570 = vmatpush1.msra.mxu0 0.0
  %1571 = vmatprep.subr.mxu0 0.0
  %1572 = vmatpush1.msra.mxu0 0.0
  %1573 = vmatprep.subr.mxu0 0.0
  %1574 = vmatpush1.msra.mxu0 0.0
  %1575 = vmatprep.subr.mxu0 0.0
  %1576 = vmatpush1.msra.mxu0 0.0
  %1577 = vmatprep.subr.mxu0 0.0
  %1578 = vmatpush1.msra.mxu0 0.0
  %1579 = vmatprep.subr.mxu0 0.0
  %1580 = vmatpush1.msra.mxu0 0.0
  %1581 = vmatprep.subr.mxu0 0.0
  %1582 = vmatpush1.msra.mxu0 0.0
  %1583 = vmatprep.subr.mxu0 0.0
  %1584 = vmatpush1.msra.mxu0 0.0
  %1585 = vmatprep.subr.mxu0 0.0
  %1586 = vmatpush1.msra.mxu0 0.0
  %1587 = vmatprep.subr.mxu0 0.0
  %1588 = vmatpush1.msra.mxu0 0.0
  %1589 = vmatprep.subr.mxu0 0.0
  %1590 = vmatpush1.msra.mxu0 0.0
  %1591 = vmatprep.subr.mxu0 0.0
  %1592 = vmatpush1.msra.mxu0 0.0
  %1593 = vmatprep.subr.mxu0 0.0
  %1594 = vmatpush1.msra.mxu0 0.0
  %1595 = vmatprep.subr.mxu0 0.0
  %1596 = vmatpush1.msra.mxu0 0.0
  %1597 = vmatprep.subr.mxu0 0.0
  %1598 = vmatpush1.msra.mxu0 0.0
  %1599 = vmatprep.subr.mxu0 0.0
  %1600 = vmatpush1.msra.mxu0 0.0
  %1601 = vmatprep.subr.mxu0 0.0
  %1602 = vmatpush1.msra.mxu0 0.0
  %1603 = vmatprep.subr.mxu0 0.0
  %1604 = vmatpush1.msra.mxu0 0.0
  %1605 = vmatprep.mubr.f32.mxu0 0.0
  %1606 = vmatmul.mubr.f32.gmra.mrb[0].mxu0 %v1397
  %v1607 = vpop.f32.mrb[0].mxu0
  %v1608 = vadd.f32 %v1394, %v1607
  %v1609 = vpop.f32.mrb[0].mxu0
  %v1610 = vadd.f32 %v1394, %v1609
  %1611 = vdwg.mxu0
  %v1612 = vadd.f32 %v1377, %v1466
  %v1613 = vadd.f32 %v1378, %v1468
  %v1614 = vadd.f32 %v1379, %v1537
  %v1615 = vadd.f32 %v1380, %v1539
  %v1616 = vadd.f32 %v1381, %v1608
  %v1617 = vadd.f32 %v1382, %v1610
  %1618 = vst [vmem:[%s10] sm:$0xff] %v1612
  %1619 = vst [vmem:[%s10 + $0x8] sm:$0xff] %v1613
  %1620 = vst [vmem:[%s10 + $0x10] sm:$0xff] %v1614
  %1621 = vst [vmem:[%s10 + $0x18] sm:$0xff] %v1615
  %1622 = vst [vmem:[%s10 + $0x20] sm:$0xff] %v1616
  %1623 = vst.msk [vmem:[%s10 + $0x28] sm:$0xff] %vm79, %v1617
  // Predicated region
  $region42: #{ccr_block.1} parent=0 // pred_check
    _
  $region43: #{ccr_block.1} parent=0 // pred_check_branch
    %1625 = sbr.rel (0) target = $region45
  $region44: #{ccr_block.1} parent=0 // pred_region
    _
  $region45: #{ccr_block.1} parent=0 // pred_fallthru
    _
  // Predicated region
  $region46: #{ccr_block.1} parent=0 // pred_check
    _
  $region47: #{ccr_block.1} parent=0 // pred_check_branch
    %1627 = sbr.rel (0) target = $region49
  $region48: #{ccr_block.1} parent=0 // pred_region
    _
  $region49: #{ccr_block.1} parent=0 // pred_fallthru
    _

</llo_original>
